<compile_context>
chip_gen: v7x
topology: tpu7x:2x2x1
jax: 0.10.0
libtpu: 0.0.40
codegen_flags: <defaults>
</compile_context>

<pallas_src>
import math

import jax
import jax.numpy as jnp
from jax import lax
from jax.experimental import pallas as pl
from jax.experimental.pallas import tpu as pltpu


# ---------------------------------------------------------------------------
# Hardware helpers
# ---------------------------------------------------------------------------
_GEN_CACHE = None


def _tpu_generation():
    """Best-effort TPU generation (5 = v5e, 6 = v6e, 7 = v7x)."""
    global _GEN_CACHE
    if _GEN_CACHE is None:
        gen = 6
        try:
            kind = jax.devices()[0].device_kind.lower()
            if "v7" in kind or "7x" in kind:
                gen = 7
            elif "v6" in kind:
                gen = 6
            elif "v5" in kind:
                gen = 5
            elif "v4" in kind:
                gen = 4
            elif "v3" in kind:
                gen = 3
        except Exception:
            pass
        _GEN_CACHE = gen
    return _GEN_CACHE


_BUFFERED_OK = None


def _buffered_supported():
    """Probe once whether BlockSpec(pipeline_mode=pl.Buffered(1)) lowers."""
    global _BUFFERED_OK
    if _BUFFERED_OK is None:
        def _probe(x_ref, o_ref):
            o_ref[...] = x_ref[...] + 1.0

        try:
            x = jnp.zeros((8, 128), jnp.float32)
            out = pl.pallas_call(
                _probe,
                out_shape=jax.ShapeDtypeStruct((16, 128), jnp.float32),
                grid=(2,),
                in_specs=[pl.BlockSpec((8, 128), lambda i: (0, 0),
                                       pipeline_mode=pl.Buffered(1))],
                out_specs=pl.BlockSpec((8, 128), lambda i: (i, 0)),
            )(x)
            jax.block_until_ready(out)
            _BUFFERED_OK = True
        except Exception:
            _BUFFERED_OK = False
    return _BUFFERED_OK


# ---------------------------------------------------------------------------
# Pallas kernel (factory: static shape / dtype / layout flags baked in)
# ---------------------------------------------------------------------------
def _make_attention_kernel(C, C8, C2, HW, HW4, TQ, CH, cd, exp_dtype,
                           out_transposed):
    CW = 2 * C8 + C2
    n_chunks = HW4 // CH

    def kernel(x_ref, w_all_ref, wo_ref, out_ref,
               theta_scr, phi_nt_scr, phiT_scr, g_scr):
        # x_ref     : (1, HW, C)  block-grouped pixels, ORIGINAL dtype
        # w_all_ref : (C, CW)     fused [theta | phi | g] weights (compute dtype)
        # wo_ref    : (C2, C)     gamma-scaled output projection (compute dtype)
        # out_ref   : (1, TQ, C)  or (1, C, TQ)  (lane-dense variant for C<128)
        # theta_scr : (HW, C8)    phi_nt_scr: (HW4, C8) f32 (pre-transpose)
        # phiT_scr  : (C8, HW4)   g_scr: (HW4, C2)
        q = pl.program_id(1)

        @pl.when(q == 0)
        def _project_and_pool():
            w_all = w_all_ref[...]                      # hoisted, loop-invariant

            def do_chunk(r0):
                projs = []
                for grp in range(4):                    # 2x2 sub-pixel groups
                    xg = x_ref[0, pl.ds(grp * HW4 + r0, CH), :].astype(cd)
                    projs.append(jnp.dot(xg, w_all,
                                         preferred_element_type=jnp.float32))
                for grp in range(4):
                    theta_scr[pl.ds(grp * HW4 + r0, CH), :] = (
                        projs[grp][:, :C8].astype(theta_scr.dtype))
                # 2x2 max-pool == elementwise max over the 4 groups
                pm = jnp.maximum(jnp.maximum(projs[0], projs[1]),
                                 jnp.maximum(projs[2], projs[3]))
                phi_nt_scr[pl.ds(r0, CH), :] = pm[:, C8:2 * C8]
                g_scr[pl.ds(r0, CH), :] = pm[:, 2 * C8:].astype(g_scr.dtype)

            if n_chunks == 1:
                do_chunk(0)                             # fully static offsets
            else:
                def body(c, carry):
                    do_chunk(pl.multiple_of(c * CH, CH))
                    return carry
                lax.fori_loop(0, n_chunks, body, 0)

            # one transpose per batch element -> lane-dense (K, N) scores RHS
            phiT_scr[...] = phi_nt_scr[...].T.astype(phiT_scr.dtype)

        start = pl.multiple_of(q * TQ, TQ)
        theta_t = theta_scr[pl.ds(start, TQ), :]                  # (TQ, C8)

        # scores: plain (M,K)x(K,N) matmul, f32 accumulation on the MXU
        s = jnp.dot(theta_t, phiT_scr[...],
                    preferred_element_type=jnp.float32)           # (TQ, HW4)
        m = jnp.max(s, axis=-1, keepdims=True)
        p = jnp.exp((s - m).astype(exp_dtype))                    # bf16 EUP on v6e/v7x
        l = jnp.sum(p.astype(jnp.float32), axis=-1, keepdims=True)

        # deferred normalization: (p @ g) * 1/l  (reciprocal on the EUP slot)
        o_pre = jnp.dot(p.astype(g_scr.dtype), g_scr[...],
                        preferred_element_type=jnp.float32)       # (TQ, C2)
        o_pre = o_pre * pl.reciprocal(l, approx=True)

        # gamma is folded into wo, so the epilogue is just o + x (exact residual)
        o = jnp.dot(o_pre.astype(wo_ref.dtype), wo_ref[...],
                    preferred_element_type=jnp.float32)           # (TQ, C)
        res = o + x_ref[0, pl.ds(start, TQ), :].astype(jnp.float32)
        if out_transposed:
            out_ref[0] = res.T.astype(out_ref.dtype)              # (C, TQ) lane-dense
        else:
            out_ref[0] = res.astype(out_ref.dtype)

    return kernel


# ---------------------------------------------------------------------------
# Spectral normalization (one power iteration, matching SN.W_() for a single
# forward).  Done in plain JAX in the wrapper.
# ---------------------------------------------------------------------------
def sn_weight(w4, u, eps=1e-12):
    """w4: (out, in, 1, 1) conv weight, u: (1, out). Returns (out, in)."""
    # TODO(synk): PyTorch SN mutates the `u` buffer in place across calls;
    # buffer persistence is outside this stateless single-forward kernel.
    out_c = w4.shape[0]
    w_mat = w4.reshape(out_c, -1).astype(jnp.float32)
    u = u.astype(jnp.float32)
    v = u @ w_mat
    v = v / jnp.maximum(jnp.linalg.norm(v), eps)
    u_new = v @ w_mat.T
    u_new = u_new / jnp.maximum(jnp.linalg.norm(u_new), eps)
    sv = (v @ w_mat.T @ u_new.T)[0, 0]
    return w_mat / sv


def _prep_weights(params):
    # kernel wants (in, out) so the 1x1 conv is x_cl @ W
    wth = sn_weight(params["w_theta"], params["u_theta"]).T     # (C, C8)
    wph = sn_weight(params["w_phi"], params["u_phi"]).T         # (C, C8)
    wg = sn_weight(params["w_g"], params["u_g"]).T              # (C, C2)
    wo = sn_weight(params["w_o"], params["u_o"]).T              # (C2, C)
    return wth, wph, wg, wo


# ---------------------------------------------------------------------------
# Tiling / VMEM heuristics (generation-aware)
# ---------------------------------------------------------------------------
def _pick_tq(HW, HW4, gen):
    """Largest query tile dividing HW that keeps the (TQ, HW4) f32 score/exp
    intermediates inside a generation-appropriate budget; multiple of 256 on
    v6e/v7x (MXU M-fill), 128 on v5e, always a multiple of 16 (bf16 pairs)."""
    if gen >= 7:
        budget_bytes, cap = 7 << 20, 512        # 64 MiB VMEM per core on v7x
    else:
        budget_bytes, cap = 14 << 20, 1024      # 128 MiB on v5e / v6e
    budget_rows = max(16, budget_bytes // max(1, HW4 * 4 * 3))
    upper = max(1, min(HW, cap, budget_rows))
    pref = 256 if gen >= 6 else 128
    for mult in (pref, 128, 64, 32, 16):
        cand = (upper // mult) * mult
        while cand >= mult:
            if HW % cand == 0:
                return cand
            cand -= mult
    for cand in range(min(upper, HW), 0, -1):   # last resort
        if HW % cand == 0 and (cand % 8 == 0 or cand == HW):
            return cand
    return HW


def _pick_proj_chunk(HW4, CW):
    """Chunk rows for the q==0 projection: bound the per-chunk f32
    intermediates (4 groups) to ~2 MiB; multiple of 16 or the whole HW4."""
    target = max(16, (2 << 20) // max(1, CW * 4 * 4))
    upper = max(1, min(HW4, 512, target))
    for mult in (128, 64, 32, 16):
        cand = (upper // mult) * mult
        while cand >= mult:
            if HW4 % cand == 0:
                return cand
            cand -= mult
    return HW4      # single chunk -> static offsets, any alignment is fine


def _vmem_limit_bytes(HW, HW4, C, C8, C2, CW, TQ, CH, gen,
                      x_bytes, cd_bytes, out_bytes, x_single, w_single):
    est = 0
    est += (1 if x_single else 2) * HW * C * x_bytes            # x window
    est += (1 if w_single else 2) * (C * CW + C2 * C) * cd_bytes  # weights
    est += 2 * TQ * C * out_bytes                               # output tile
    est += HW * C8 * cd_bytes                                   # theta scratch
    est += HW4 * C8 * 4                                         # pooled phi (f32)
    est += max(C8, 8) * HW4 * cd_bytes                          # transposed phi
    est += HW4 * C2 * cd_bytes                                  # pooled g
    est += 4 * CH * (CW * 4 + C * cd_bytes)                     # per-chunk temps
    est += 3 * TQ * max(HW4, 128) * 4                           # scores / exp
    est += TQ * (C2 + 2 * C) * 4                                # o_pre / o / residual
    est = int(1.4 * est) + (2 << 20)                            # padding + headroom
    try:
        cap = int(getattr(pltpu.get_tpu_info(), "vmem_capacity_bytes"))
    except Exception:
        cap = (64 << 20) if gen >= 7 else (128 << 20)
    return int(min(max(est, 32 << 20), cap * 7 // 8))


# ---------------------------------------------------------------------------
# Wrapper: layout plumbing + pallas_call
# ---------------------------------------------------------------------------
def attention_forward(x, params, compute_dtype=jnp.bfloat16,
                      tq=None, proj_chunk=None):
    """x: (B, C, H, W) NCHW, returns (B, C, H, W) in x.dtype."""
    B, C, H, W = x.shape
    assert C % 8 == 0 and H % 2 == 0 and W % 2 == 0
    C8, C2 = C // 8, C // 2
    HW, HW4 = H * W, (H * W) // 4
    CW = 2 * C8 + C2
    cd = jnp.dtype(compute_dtype)
    gen = _tpu_generation()

    wth, wph, wg, wo = _prep_weights(params)
    gamma = jnp.asarray(params["gamma"], jnp.float32)
    w_all = jnp.concatenate([wth, wph, wg], axis=1).astype(cd)   # (C, 2*C8+C2)
    wo_scaled = (gamma * wo).astype(cd)                          # gamma folded in

    # NCHW -> channels-last, 2x2-block-grouped, spatially flattened.  x keeps
    # its ORIGINAL dtype; the kernel casts to `cd` only for matmul inputs so
    # the residual is exact.  (Keep activations channels-last across the model
    # to drop this permute entirely.)
    x_cl = jnp.transpose(x, (0, 2, 3, 1))                        # (B, H, W, C)
    x_blk = (x_cl.reshape(B, H // 2, 2, W // 2, 2, C)
             .transpose(0, 2, 4, 1, 3, 5)                        # (B, dy, dx, r, c, C)
             .reshape(B, HW, C))

    TQ = tq if tq is not None else _pick_tq(HW, HW4, gen)
    assert HW % TQ == 0
    nq = HW // TQ
    CH = proj_chunk if proj_chunk is not None else _pick_proj_chunk(HW4, CW)
    assert HW4 % CH == 0

    # bf16 exp only where the EUP has a bf16 path (v6e / v7x)
    exp_dtype = cd if (gen >= 6 and cd == jnp.dtype(jnp.bfloat16)) else jnp.float32

    # lane-dense output for small C: emit (B, C, HW) (lane dim = TQ)
    out_transposed = (C < 128) and (TQ % 128 == 0 or TQ == HW) and (TQ > C)

    buffered_ok = _buffered_supported()
    x_bytes = jnp.dtype(x.dtype).itemsize
    w_single = buffered_ok                                        # constant index map
    x_single = buffered_ok and gen >= 7 and (HW * C * x_bytes > (6 << 20))

    def _spec(shape, index_map, single):
        if single:
            return pl.BlockSpec(shape, index_map, pipeline_mode=pl.Buffered(1))
        return pl.BlockSpec(shape, index_map)

    vmem_limit = _vmem_limit_bytes(HW, HW4, C, C8, C2, CW, TQ, CH, gen,
                                   x_bytes, cd.itemsize,
                                   jnp.dtype(x.dtype).itemsize,
                                   x_single, w_single)

    if out_transposed:
        out_shape = jax.ShapeDtypeStruct((B, C, HW), x.dtype)
        out_spec = pl.BlockSpec((1, C, TQ), lambda b, q: (b, 0, q))
    else:
        out_shape = jax.ShapeDtypeStruct((B, HW, C), x.dtype)
        out_spec = pl.BlockSpec((1, TQ, C), lambda b, q: (b, q, 0))

    kernel = _make_attention_kernel(C, C8, C2, HW, HW4, TQ, CH, cd, exp_dtype,
                                    out_transposed)

    # TODO(synk): for B == 1 on v7x (2 TensorCores) add a core-split grid axis
    # with a redundant per-core projection so the second core does not idle.
    out_flat = pl.pallas_call(
        kernel,
        out_shape=out_shape,
        grid_spec=pltpu.PrefetchScalarGridSpec(
            num_scalar_prefetch=0,
            grid=(B, nq),
            in_specs=[
                # x stays resident across the query-tile axis (index map
                # ignores q), so it is DMA'd once per batch element.
                _spec((1, HW, C), lambda b, q: (b, 0, 0), x_single),
                _spec((C, CW), lambda b, q: (0, 0), w_single),
                _spec((C2, C), lambda b, q: (0, 0), w_single),
            ],
            out_specs=out_spec,
            scratch_shapes=[
                pltpu.VMEM((HW, C8), cd),            # theta for all pixels
                pltpu.VMEM((HW4, C8), jnp.float32),  # pooled phi (pre-transpose)
                pltpu.VMEM((C8, HW4), cd),           # pooled phi, transposed
                pltpu.VMEM((HW4, C2), cd),           # pooled g
            ],
        ),
        compiler_params=pltpu.CompilerParams(
            dimension_semantics=("parallel", "arbitrary"),
            vmem_limit_bytes=vmem_limit),
    )(x_blk, w_all, wo_scaled)

    # undo the block-grouped pixel permutation, back to NCHW
    if out_transposed:
        out = (out_flat.reshape(B, C, 2, 2, H // 2, W // 2)
               .transpose(0, 1, 4, 2, 5, 3)
               .reshape(B, C, H, W))
    else:
        out = (out_flat.reshape(B, 2, 2, H // 2, W // 2, C)
               .transpose(0, 3, 1, 4, 2, 5)
               .reshape(B, H, W, C))
        out = jnp.transpose(out, (0, 3, 1, 2))
    return out


# ---------------------------------------------------------------------------
# Plain-JAX reference (same math; compute_dtype controls matmul-input cast,
# residual is kept in f32 like the kernel / PyTorch)
# ---------------------------------------------------------------------------
def reference_forward(x, params, compute_dtype=jnp.float32):
    B, C, H, W = x.shape
    C8, C2 = C // 8, C // 2
    HW, HW4 = H * W, (H * W) // 4
    cd, f32 = jnp.dtype(compute_dtype), jnp.float32
    wth, wph, wg, wo = _prep_weights(params)
    gamma = jnp.asarray(params["gamma"], f32)

    x_cl = jnp.transpose(x, (0, 2, 3, 1)).astype(f32)            # (B, H, W, C)
    xc = x_cl.astype(cd)
    theta = jnp.einsum("bhwc,cd->bhwd", xc, wth.astype(cd),
                       preferred_element_type=f32)
    phi = jnp.einsum("bhwc,cd->bhwd", xc, wph.astype(cd),
                     preferred_element_type=f32)
    g = jnp.einsum("bhwc,cd->bhwd", xc, wg.astype(cd),
                   preferred_element_type=f32)

    def pool(t):  # 2x2 spatial max-pool then flatten
        return (t.reshape(B, H // 2, 2, W // 2, 2, -1).max(axis=(2, 4))
                .reshape(B, HW4, -1))

    theta = theta.reshape(B, HW, C8)
    phi_p, g_p = pool(phi), pool(g)

    s = jnp.einsum("bqc,bpc->bqp", theta.astype(cd), phi_p.astype(cd),
                   preferred_element_type=f32)
    beta = jax.nn.softmax(s, axis=-1)
    o = jnp.einsum("bqp,bpc->bqc", beta.astype(cd), g_p.astype(cd),
                   preferred_element_type=f32)
    o = jnp.einsum("bqc,cd->bqd", o.astype(cd), wo.astype(cd),
                   preferred_element_type=f32)
    out = gamma * o + x_cl.reshape(B, HW, C)
    return jnp.transpose(out.reshape(B, H, W, C), (0, 3, 1, 2)).astype(x.dtype)


# ---------------------------------------------------------------------------
if __name__ == "__main__":
    key = jax.random.PRNGKey(0)
    B, ch, H, W = 2, 32, 16, 16
    ks = jax.random.split(key, 9)

    x = jax.random.normal(ks[0], (B, ch, H, W), jnp.float32)

    def conv_w(k, out_c, in_c):  # PyTorch 1x1 conv default init
        bound = 1.0 / math.sqrt(in_c)
        return jax.random.uniform(k, (out_c, in_c, 1, 1), jnp.float32,
                                  -bound, bound)

    params = {
        "w_theta": conv_w(ks[1], ch // 8, ch),
        "w_phi":   conv_w(ks[2], ch // 8, ch),
        "w_g":     conv_w(ks[3], ch // 2, ch),
        "w_o":     conv_w(ks[4], ch, ch // 2),
        "u_theta": jax.random.normal(ks[5], (1, ch // 8), jnp.float32),
        "u_phi":   jax.random.normal(ks[6], (1, ch // 8), jnp.float32),
        "u_g":     jax.random.normal(ks[7], (1, ch // 2), jnp.float32),
        "u_o":     jax.random.normal(ks[8], (1, ch), jnp.float32),
        "gamma":   0.0,   # module init: gamma = 0  ->  output == input
    }

    # gamma = 0 (module init): residual path is exact -> output equals input
    out0 = jax.block_until_ready(attention_forward(x, params))
    assert jnp.allclose(out0, x, atol=1e-6, rtol=0.0), "gamma=0 residual mismatch"

    # nonzero gamma exercises the full attention path (lane-dense output, C<128)
    params_g = dict(params, gamma=0.5)
    out_g = jax.block_until_ready(attention_forward(x, params_g))
    ref_bf16 = reference_forward(x, params_g, compute_dtype=jnp.bfloat16)
    ref_f32 = reference_forward(x, params_g, compute_dtype=jnp.float32)
    assert jnp.allclose(out_g, ref_bf16, atol=2e-2, rtol=2e-2), "bf16 ref mismatch"
    assert jnp.allclose(out_g, ref_f32, atol=6e-2, rtol=6e-2), "f32 ref mismatch"

    # exercise the multi-query-tile, chunked-projection (fori_loop) and
    # non-transposed-output code paths on the same data
    out_t = jax.block_until_ready(
        attention_forward(x, params_g, tq=64, proj_chunk=16))
    assert jnp.allclose(out_t, ref_bf16, atol=2e-2, rtol=2e-2), "tiled-path mismatch"

    print("KERNEL_OK")
</pallas_src>

<mosaic_0001>
module attributes {stable_mosaic.version = 11 : i64} {
  func.func @_probe(%arg0: i32, %arg1: memref<8x128xf32, #tpu.memory_space<vmem>>, %arg2: memref<8x128xf32, #tpu.memory_space<vmem>>) attributes {dimension_semantics = [#tpu.dimension_semantics<arbitrary>], iteration_bounds = array<i64: 2>, scalar_prefetch = 0 : i64, scratch_operands = 0 : i64, tpu.core_type = #tpu.core_type<tc>, window_params = [{pipeline_mode = #tpu.pipeline_mode<synchronous>, transform_indices = @transform_0, window_bounds = array<i64: 8, 128>}, {transform_indices = @transform_1, window_bounds = array<i64: 8, 128>}]} {
    %c0 = arith.constant 0 : index
    %c0_0 = arith.constant 0 : index
    %0 = vector.load %arg1[%c0, %c0_0] : memref<8x128xf32, #tpu.memory_space<vmem>>, vector<8x128xf32>
    %cst = arith.constant 1.000000e+00 : f32
    %1 = vector.broadcast %cst : f32 to vector<8x128xf32>
    %2 = arith.addf %0, %1 : vector<8x128xf32>
    %c0_1 = arith.constant 0 : index
    %c0_2 = arith.constant 0 : index
    %3 = vector.load %arg2[%c0_1, %c0_2] : memref<8x128xf32, #tpu.memory_space<vmem>>, vector<8x128xf32>
    tpu.vector_store %arg2[%c0_1, %c0_2], %2 {strides = array<i32>} : memref<8x128xf32, #tpu.memory_space<vmem>>, vector<8x128xf32>,
    return
  }
  func.func @transform_0(%arg0: i32) -> (i32, i32) {
    %c0_i32 = arith.constant 0 : i32
    %c0_i32_0 = arith.constant 0 : i32
    %c0_i32_1 = arith.constant 0 : i32
    return %c0_i32, %c0_i32_0 : i32, i32
  }
  func.func @transform_1(%arg0: i32) -> (i32, i32) {
    %c0_i32 = arith.constant 0 : i32
    %c0_i32_0 = arith.constant 0 : i32
    return %arg0, %c0_i32 : i32, i32
  }
}

module attributes {stable_mosaic.version = 11 : i64} {
  func.func @kernel(%arg0: i32, %arg1: i32, %arg2: memref<1x256x32xf32, #tpu.memory_space<vmem>>, %arg3: memref<32x24xbf16, #tpu.memory_space<vmem>>, %arg4: memref<16x32xbf16, #tpu.memory_space<vmem>>, %arg5: memref<1x32x256xf32, #tpu.memory_space<vmem>>, %arg6: memref<256x4xbf16, #tpu.memory_space<vmem>>, %arg7: memref<64x4xf32, #tpu.memory_space<vmem>>, %arg8: memref<4x64xbf16, #tpu.memory_space<vmem>>, %arg9: memref<64x16xbf16, #tpu.memory_space<vmem>>) attributes {dimension_semantics = [#tpu.dimension_semantics<parallel>, #tpu.dimension_semantics<arbitrary>], iteration_bounds = array<i64: 2, 1>, scalar_prefetch = 0 : i64, scratch_operands = 4 : i64, tpu.core_type = #tpu.core_type<tc>, window_params = [{transform_indices = @transform_0, window_bounds = array<i64: 1, 256, 32>}, {pipeline_mode = #tpu.pipeline_mode<synchronous>, transform_indices = @transform_1, window_bounds = array<i64: 32, 24>}, {pipeline_mode = #tpu.pipeline_mode<synchronous>, transform_indices = @transform_2, window_bounds = array<i64: 16, 32>}, {transform_indices = @transform_3, window_bounds = array<i64: 1, 32, 256>}]} {
    %c0_i32 = arith.constant 0 : i32
    %0 = arith.cmpi eq, %arg1, %c0_i32 : i32
    %1 = arith.extui %0 : i1 to i32
    %c0_i32_0 = arith.constant 0 : i32
    %2 = arith.cmpi ne, %1, %c0_i32_0 : i32
    scf.if %2 {
      %c0_16 = arith.constant 0 : index
      %c0_17 = arith.constant 0 : index
      %34 = vector.load %arg3[%c0_16, %c0_17] : memref<32x24xbf16, #tpu.memory_space<vmem>>, vector<32x24xbf16>
      %c0_18 = arith.constant 0 : index
      %c0_19 = arith.constant 0 : index
      %c0_20 = arith.constant 0 : index
      %35 = vector.load %arg2[%c0_18, %c0_19, %c0_20] : memref<1x256x32xf32, #tpu.memory_space<vmem>>, vector<1x64x32xf32>
      %36 = vector.shape_cast %35 : vector<1x64x32xf32> to vector<64x32xf32>
      %37 = arith.truncf %36 : vector<64x32xf32> to vector<64x32xbf16>
      %cst_21 = arith.constant dense<0.000000e+00> : vector<64x24xf32>
      %38 = tpu.matmul %37, %34, %cst_21 {dimension_numbers = #tpu.dot_dimension_numbers<[1], [0], [0], [1], [0, 0, 1, 1], [], []>} : vector<64x32xbf16>, vector<32x24xbf16>, vector<64x24xf32> -> vector<64x24xf32>
      %c0_22 = arith.constant 0 : index
      %c64 = arith.constant 64 : index
      %c0_23 = arith.constant 0 : index
      %39 = vector.load %arg2[%c0_22, %c64, %c0_23] : memref<1x256x32xf32, #tpu.memory_space<vmem>>, vector<1x64x32xf32>
      %40 = vector.shape_cast %39 : vector<1x64x32xf32> to vector<64x32xf32>
      %41 = arith.truncf %40 : vector<64x32xf32> to vector<64x32xbf16>
      %cst_24 = arith.constant dense<0.000000e+00> : vector<64x24xf32>
      %42 = tpu.matmul %41, %34, %cst_24 {dimension_numbers = #tpu.dot_dimension_numbers<[1], [0], [0], [1], [0, 0, 1, 1], [], []>} : vector<64x32xbf16>, vector<32x24xbf16>, vector<64x24xf32> -> vector<64x24xf32>
      %c0_25 = arith.constant 0 : index
      %c128 = arith.constant 128 : index
      %c0_26 = arith.constant 0 : index
      %43 = vector.load %arg2[%c0_25, %c128, %c0_26] : memref<1x256x32xf32, #tpu.memory_space<vmem>>, vector<1x64x32xf32>
      %44 = vector.shape_cast %43 : vector<1x64x32xf32> to vector<64x32xf32>
      %45 = arith.truncf %44 : vector<64x32xf32> to vector<64x32xbf16>
      %cst_27 = arith.constant dense<0.000000e+00> : vector<64x24xf32>
      %46 = tpu.matmul %45, %34, %cst_27 {dimension_numbers = #tpu.dot_dimension_numbers<[1], [0], [0], [1], [0, 0, 1, 1], [], []>} : vector<64x32xbf16>, vector<32x24xbf16>, vector<64x24xf32> -> vector<64x24xf32>
      %c0_28 = arith.constant 0 : index
      %c192 = arith.constant 192 : index
      %c0_29 = arith.constant 0 : index
      %47 = vector.load %arg2[%c0_28, %c192, %c0_29] : memref<1x256x32xf32, #tpu.memory_space<vmem>>, vector<1x64x32xf32>
      %48 = vector.shape_cast %47 : vector<1x64x32xf32> to vector<64x32xf32>
      %49 = arith.truncf %48 : vector<64x32xf32> to vector<64x32xbf16>
      %cst_30 = arith.constant dense<0.000000e+00> : vector<64x24xf32>
      %50 = tpu.matmul %49, %34, %cst_30 {dimension_numbers = #tpu.dot_dimension_numbers<[1], [0], [0], [1], [0, 0, 1, 1], [], []>} : vector<64x32xbf16>, vector<32x24xbf16>, vector<64x24xf32> -> vector<64x24xf32>
      %51 = vector.extract_strided_slice %38 {offsets = [0, 0], sizes = [64, 4], strides = [1, 1]} : vector<64x24xf32> to vector<64x4xf32>
      %52 = arith.truncf %51 : vector<64x4xf32> to vector<64x4xbf16>
      %c0_31 = arith.constant 0 : index
      %c0_32 = arith.constant 0 : index
      %53 = vector.load %arg6[%c0_31, %c0_32] : memref<256x4xbf16, #tpu.memory_space<vmem>>, vector<64x4xbf16>
      tpu.vector_store %arg6[%c0_31, %c0_32], %52 {strides = array<i32>} : memref<256x4xbf16, #tpu.memory_space<vmem>>, vector<64x4xbf16>,
      %54 = vector.extract_strided_slice %42 {offsets = [0, 0], sizes = [64, 4], strides = [1, 1]} : vector<64x24xf32> to vector<64x4xf32>
      %55 = arith.truncf %54 : vector<64x4xf32> to vector<64x4xbf16>
      %c64_33 = arith.constant 64 : index
      %c0_34 = arith.constant 0 : index
      %56 = vector.load %arg6[%c64_33, %c0_34] : memref<256x4xbf16, #tpu.memory_space<vmem>>, vector<64x4xbf16>
      tpu.vector_store %arg6[%c64_33, %c0_34], %55 {strides = array<i32>} : memref<256x4xbf16, #tpu.memory_space<vmem>>, vector<64x4xbf16>,
      %57 = vector.extract_strided_slice %46 {offsets = [0, 0], sizes = [64, 4], strides = [1, 1]} : vector<64x24xf32> to vector<64x4xf32>
      %58 = arith.truncf %57 : vector<64x4xf32> to vector<64x4xbf16>
      %c128_35 = arith.constant 128 : index
      %c0_36 = arith.constant 0 : index
      %59 = vector.load %arg6[%c128_35, %c0_36] : memref<256x4xbf16, #tpu.memory_space<vmem>>, vector<64x4xbf16>
      tpu.vector_store %arg6[%c128_35, %c0_36], %58 {strides = array<i32>} : memref<256x4xbf16, #tpu.memory_space<vmem>>, vector<64x4xbf16>,
      %60 = vector.extract_strided_slice %50 {offsets = [0, 0], sizes = [64, 4], strides = [1, 1]} : vector<64x24xf32> to vector<64x4xf32>
      %61 = arith.truncf %60 : vector<64x4xf32> to vector<64x4xbf16>
      %c192_37 = arith.constant 192 : index
      %c0_38 = arith.constant 0 : index
      %62 = vector.load %arg6[%c192_37, %c0_38] : memref<256x4xbf16, #tpu.memory_space<vmem>>, vector<64x4xbf16>
      tpu.vector_store %arg6[%c192_37, %c0_38], %61 {strides = array<i32>} : memref<256x4xbf16, #tpu.memory_space<vmem>>, vector<64x4xbf16>,
      %63 = arith.maximumf %38, %42 : vector<64x24xf32>
      %64 = arith.maximumf %46, %50 : vector<64x24xf32>
      %65 = arith.maximumf %63, %64 : vector<64x24xf32>
      %66 = vector.extract_strided_slice %65 {offsets = [0, 4], sizes = [64, 4], strides = [1, 1]} : vector<64x24xf32> to vector<64x4xf32>
      %c0_39 = arith.constant 0 : index
      %c0_40 = arith.constant 0 : index
      %67 = vector.load %arg7[%c0_39, %c0_40] : memref<64x4xf32, #tpu.memory_space<vmem>>, vector<64x4xf32>
      tpu.vector_store %arg7[%c0_39, %c0_40], %66 {strides = array<i32>} : memref<64x4xf32, #tpu.memory_space<vmem>>, vector<64x4xf32>,
      %68 = vector.extract_strided_slice %65 {offsets = [0, 8], sizes = [64, 16], strides = [1, 1]} : vector<64x24xf32> to vector<64x16xf32>
      %69 = arith.truncf %68 : vector<64x16xf32> to vector<64x16xbf16>
      %c0_41 = arith.constant 0 : index
      %c0_42 = arith.constant 0 : index
      %70 = vector.load %arg9[%c0_41, %c0_42] : memref<64x16xbf16, #tpu.memory_space<vmem>>, vector<64x16xbf16>
      tpu.vector_store %arg9[%c0_41, %c0_42], %69 {strides = array<i32>} : memref<64x16xbf16, #tpu.memory_space<vmem>>, vector<64x16xbf16>,
      %c0_43 = arith.constant 0 : index
      %c0_44 = arith.constant 0 : index
      %71 = vector.load %arg7[%c0_43, %c0_44] : memref<64x4xf32, #tpu.memory_space<vmem>>, vector<64x4xf32>
      %72 = tpu.transpose %71, [1, 0] : vector<64x4xf32> -> vector<4x64xf32>
      %73 = arith.truncf %72 : vector<4x64xf32> to vector<4x64xbf16>
      %c0_45 = arith.constant 0 : index
      %c0_46 = arith.constant 0 : index
      %74 = vector.load %arg8[%c0_45, %c0_46] : memref<4x64xbf16, #tpu.memory_space<vmem>>, vector<4x64xbf16>
      tpu.vector_store %arg8[%c0_45, %c0_46], %73 {strides = array<i32>} : memref<4x64xbf16, #tpu.memory_space<vmem>>, vector<4x64xbf16>,
    } else {
    }
    %c256_i32 = arith.constant 256 : i32
    %3 = arith.muli %arg1, %c256_i32 : i32
    %4 = tpu.assume_multiple %3, 256 : i32
    %5 = arith.index_cast %4 : i32 to index
    %c0 = arith.constant 0 : index
    %6 = vector.load %arg6[%5, %c0] : memref<256x4xbf16, #tpu.memory_space<vmem>>, vector<256x4xbf16>
    %c0_1 = arith.constant 0 : index
    %c0_2 = arith.constant 0 : index
    %7 = vector.load %arg8[%c0_1, %c0_2] : memref<4x64xbf16, #tpu.memory_space<vmem>>, vector<4x64xbf16>
    %cst = arith.constant dense<0.000000e+00> : vector<256x64xf32>
    %8 = tpu.matmul %6, %7, %cst {dimension_numbers = #tpu.dot_dimension_numbers<[1], [0], [0], [1], [0, 0, 1, 1], [], []>} : vector<256x4xbf16>, vector<4x64xbf16>, vector<256x64xf32> -> vector<256x64xf32>
    %cst_3 = arith.constant dense<0xFF800000> : vector<256xf32>
    %9 = vector.multi_reduction <maximumf>, %8, %cst_3 [1] : vector<256x64xf32> to vector<256xf32>
    %10 = vector.shape_cast %9 : vector<256xf32> to vector<256x1xf32>
    %11 = vector.broadcast %10 : vector<256x1xf32> to vector<256x64xf32>
    %12 = arith.subf %8, %11 : vector<256x64xf32>
    %13 = arith.truncf %12 : vector<256x64xf32> to vector<256x64xbf16>
    %14 = math.exp %13 : vector<256x64xbf16>
    %15 = arith.extf %14 : vector<256x64xbf16> to vector<256x64xf32>
    %cst_4 = arith.constant dense<0.000000e+00> : vector<256xf32>
    %16 = vector.multi_reduction <add>, %15, %cst_4 [1] : vector<256x64xf32> to vector<256xf32>
    %17 = vector.shape_cast %16 : vector<256xf32> to vector<256x1xf32>
    %c0_5 = arith.constant 0 : index
    %c0_6 = arith.constant 0 : index
    %18 = vector.load %arg9[%c0_5, %c0_6] : memref<64x16xbf16, #tpu.memory_space<vmem>>, vector<64x16xbf16>
    %cst_7 = arith.constant dense<0.000000e+00> : vector<256x16xf32>
    %19 = tpu.matmul %14, %18, %cst_7 {dimension_numbers = #tpu.dot_dimension_numbers<[1], [0], [0], [1], [0, 0, 1, 1], [], []>} : vector<256x64xbf16>, vector<64x16xbf16>, vector<256x16xf32> -> vector<256x16xf32>
    %20 = tpu.reciprocal %17 {approx = true} : vector<256x1xf32> -> vector<256x1xf32>
    %21 = vector.broadcast %20 : vector<256x1xf32> to vector<256x16xf32>
    %22 = arith.mulf %19, %21 : vector<256x16xf32>
    %23 = arith.truncf %22 : vector<256x16xf32> to vector<256x16xbf16>
    %c0_8 = arith.constant 0 : index
    %c0_9 = arith.constant 0 : index
    %24 = vector.load %arg4[%c0_8, %c0_9] : memref<16x32xbf16, #tpu.memory_space<vmem>>, vector<16x32xbf16>
    %cst_10 = arith.constant dense<0.000000e+00> : vector<256x32xf32>
    %25 = tpu.matmul %23, %24, %cst_10 {dimension_numbers = #tpu.dot_dimension_numbers<[1], [0], [0], [1], [0, 0, 1, 1], [], []>} : vector<256x16xbf16>, vector<16x32xbf16>, vector<256x32xf32> -> vector<256x32xf32>
    %c0_11 = arith.constant 0 : index
    %26 = arith.index_cast %4 : i32 to index
    %c0_12 = arith.constant 0 : index
    %27 = vector.load %arg2[%c0_11, %26, %c0_12] : memref<1x256x32xf32, #tpu.memory_space<vmem>>, vector<1x256x32xf32>
    %28 = vector.shape_cast %27 : vector<1x256x32xf32> to vector<256x32xf32>
    %29 = arith.addf %25, %28 : vector<256x32xf32>
    %30 = tpu.transpose %29, [1, 0] : vector<256x32xf32> -> vector<32x256xf32>
    %c0_13 = arith.constant 0 : index
    %c0_14 = arith.constant 0 : index
    %c0_15 = arith.constant 0 : index
    %31 = vector.load %arg5[%c0_13, %c0_14, %c0_15] : memref<1x32x256xf32, #tpu.memory_space<vmem>>, vector<1x32x256xf32>
    %32 = vector.shape_cast %31 : vector<1x32x256xf32> to vector<32x256xf32>
    %33 = vector.shape_cast %30 : vector<32x256xf32> to vector<1x32x256xf32>
    tpu.vector_store %arg5[%c0_13, %c0_14, %c0_15], %33 {strides = array<i32>} : memref<1x32x256xf32, #tpu.memory_space<vmem>>, vector<1x32x256xf32>,
    return
  }
  func.func @transform_0(%arg0: i32, %arg1: i32) -> (i32, i32, i32) {
    %c0_i32 = arith.constant 0 : i32
    %c0_i32_0 = arith.constant 0 : i32
    %c0_i32_1 = arith.constant 0 : i32
    return %arg0, %c0_i32, %c0_i32_0 : i32, i32, i32
  }
  func.func @transform_1(%arg0: i32, %arg1: i32) -> (i32, i32) {
    %c0_i32 = arith.constant 0 : i32
    %c0_i32_0 = arith.constant 0 : i32
    %c0_i32_1 = arith.constant 0 : i32
    return %c0_i32, %c0_i32_0 : i32, i32
  }
  func.func @transform_2(%arg0: i32, %arg1: i32) -> (i32, i32) {
    %c0_i32 = arith.constant 0 : i32
    %c0_i32_0 = arith.constant 0 : i32
    %c0_i32_1 = arith.constant 0 : i32
    return %c0_i32, %c0_i32_0 : i32, i32
  }
  func.func @transform_3(%arg0: i32, %arg1: i32) -> (i32, i32, i32) {
    %c0_i32 = arith.constant 0 : i32
    %c0_i32_0 = arith.constant 0 : i32
    return %arg0, %c0_i32, %arg1 : i32, i32, i32
  }
}

</mosaic_0001>

<llo_original>
// kernel: tpu_custom_call.1
$region0: #{tpu_custom_call.1}
  #allocation0 [shape = 'u32[]', space=smem, size = 0x4, offset = 0x4, fixed_abs, tag = 'smem constant byte address 0x4 - core index']
  #allocation1 [shape = 'u32[144,128]{1,0:T(1,128)}', space=vmem, size = 0x12000, scoped, tag = 'internal scratch']
  %s0 = inlined_call_operand.hbm [shape: f32[8,128], index: 0, kind: input, shape index: {}]
  %s1 = inlined_call_operand.hbm [shape: f32[16,128], index: 1, kind: output, shape index: {}]
  %s2 = sld [smem:[#allocation0]]
  $region41: #{tpu_custom_call.1} parent=0
    _
  %s4 = ssub.s32 1, %s2
  %s5 = scalar_select 0, %s4, %s2
  $region1: #{tpu_custom_call.1} parent=0
    #allocation2 [shape = 'u8[4096]{0}', space=vmem, size = 0x1000, scoped, tag = 'input window, operand 0, single buffered']
    #allocation3 [shape = 's32[2]{0}', space=sflag, size = 0x8, scoped, tag = 'scoped memory for tpu_custom_call.1']
    #allocation4 [shape = 's32[2]{0}', space=sflag, size = 0x8, scoped, tag = 'scoped memory for tpu_custom_call.1']
    #allocation5 [shape = 'u8[8192]{0}', space=vmem, size = 0x2000, scoped, tag = 'output window, operand 0']
    %6 = vsyncpa [#allocation3], 0
    %7 = vsyncpa [#allocation4], 0
    %s8 = scalar_lea.sflag [#allocation4], 1
    %9 = vsyncpa %s8, 0
    loop: start=0, step=1, limit=4
    $region2: #{tpu_custom_call.1} parent=1 // loop_pre_header
      _
    $region3: #{tpu_custom_call.1} parent=1 // loop_header
      %s11 = sphi 0, %s15
      %p12 = scmp.ge.s32.totalorder %s11, 4
      %s19 = sphi 0, %s19
      %s21 = sphi 0, %s19
      %s22 = sphi 0, %s21
      %s36 = sphi 0, %s22
      %s42 = sphi 0, %s44
      %s45 = sphi 0, %s42
      %s46 = sphi 0, %s45
      %s62 = sphi 0, %s46
    $region4: #{tpu_custom_call.1} parent=1 // loop_header_branch
      %14 = sbr.rel (%p12) target = $region8
    $region5: #{tpu_custom_call.1} parent=1 // loop_body
      %s16 = ssub.s32 %s11, 1
      %s17 = ssub.s32 %s11, 2
      %s18 = sadd.s32 %s11, 1
      %s20 = sadd.s32 %s19, 1
      %p23 = scmp.eq.s32.totalorder %s11, 1
      %p24 = scmp.ne.s32.totalorder %s19, %s21
      %p25 = scmp.eq.s32.totalorder %s11, 0
      %p26 = por %p24, %p25
      %p27 = scmp.ne.s32.totalorder %s19, %s21
      %p28 = scmp.eq.s32.totalorder %s16, 1
      %p29 = por %p27, %p28
      %p30 = scmp.ne.s32.totalorder %s21, %s22
      %p31 = scmp.eq.s32.totalorder %s16, 0
      %p32 = por %p30, %p31
      %p33 = scmp.ne.s32.totalorder %s21, %s22
      %p34 = scmp.eq.s32.totalorder %s17, 1
      %p35 = por %p33, %p34
      %p37 = scmp.ne.s32.totalorder %s22, %s36
      %p38 = scmp.eq.s32.totalorder %s17, 0
      %p39 = por %p37, %p38
      %s40 = ssub.s32 %s11, %s18
      %p41 = scmp.eq.s32.totalorder %s40, 0
      %s43 = sadd.s32 %s42, 1
      %s44 = scalar_select %p41, %s42, %s43
      %p47 = pneg %p41
      %p48 = scmp.eq.s32.totalorder %s11, 1
      %p49 = por %p47, %p48
      %p50 = scmp.ne.s32.totalorder %s42, %s45
      %p51 = scmp.eq.s32.totalorder %s11, 0
      %p52 = por %p50, %p51
      %p53 = scmp.ne.s32.totalorder %s42, %s45
      %p54 = scmp.eq.s32.totalorder %s16, 1
      %p55 = por %p53, %p54
      %p56 = scmp.ne.s32.totalorder %s45, %s46
      %p57 = scmp.eq.s32.totalorder %s16, 0
      %p58 = por %p56, %p57
      %p59 = scmp.ne.s32.totalorder %s45, %s46
      %p60 = scmp.eq.s32.totalorder %s17, 1
      %p61 = por %p59, %p60
      %p63 = scmp.ne.s32.totalorder %s46, %s62
      %p64 = scmp.eq.s32.totalorder %s17, 0
      %p65 = por %p63, %p64
      %p66 = scmp.le.s32.totalorder 1, %s11
      %p67 = scmp.lt.s32.totalorder %s11, 3
      %p68 = pnand %p66, %p67
      %p69 = pneg %p68
      // Predicated region
      $region9: #{tpu_custom_call.1} parent=5 // pred_check
        _
      $region10: #{tpu_custom_call.1} parent=5 // pred_check_branch
        %71 = sbr.rel (%p68) target = $region12
      $region11: #{tpu_custom_call.1} parent=5 // pred_region
        %s72 = ssub.s32 %s11, 1
        // Predicated region
        $region13: #{tpu_custom_call.1} parent=11 // pred_check
          %p73 = pneg %p32
        $region14: #{tpu_custom_call.1} parent=11 // pred_check_branch
          %75 = sbr.rel (%p73) target = $region16
        $region15: #{tpu_custom_call.1} parent=11 // pred_region
          %s77 = ssub.s32 128, 128
          %78 = vsyncadd [#allocation3], %s77
          %s80 = sshll.u32 [#allocation2], 4
          %s81 = int_to_ptr.vmem [resolvable:$true] %s80
          %83 = dma.hbm_to_vmem [thread:$0]  %s0, 128, %s81, [#allocation3]
        $region16: #{tpu_custom_call.1} parent=11 // pred_fallthru
          _
      $region12: #{tpu_custom_call.1} parent=5 // pred_fallthru
        _
      %p84 = scmp.lt.s32.totalorder %s11, 2
      // Predicated region
      $region17: #{tpu_custom_call.1} parent=5 // pred_check
        %p85 = pneg %p84
      $region18: #{tpu_custom_call.1} parent=5 // pred_check_branch
        %87 = sbr.rel (%p85) target = $region20
      $region19: #{tpu_custom_call.1} parent=5 // pred_region
        _
      $region20: #{tpu_custom_call.1} parent=5 // pred_fallthru
        _
      %p88 = scmp.le.s32.totalorder 1, %s11
      %p89 = scmp.lt.s32.totalorder %s11, 3
      %p90 = pnand %p88, %p89
      %p91 = pneg %p90
      // Predicated region
      $region21: #{tpu_custom_call.1} parent=5 // pred_check
        _
      $region22: #{tpu_custom_call.1} parent=5 // pred_check_branch
        %93 = sbr.rel (%p90) target = $region24
      $region23: #{tpu_custom_call.1} parent=5 // pred_region
        %s94 = ssub.s32 %s11, 1
        // Predicated region
        $region25: #{tpu_custom_call.1} parent=23 // pred_check
          %p95 = pneg %p32
        $region26: #{tpu_custom_call.1} parent=23 // pred_check_branch
          %97 = sbr.rel (%p95) target = $region28
        $region27: #{tpu_custom_call.1} parent=23 // pred_region
          %98 = dma.done [#allocation3], 128
        $region28: #{tpu_custom_call.1} parent=23 // pred_fallthru
          _
        %p99 = pneg %p32
        %p100 = pneg %p29
        %p101 = pneg %p58
        %p102 = pneg %p55
        %s103 = sand.u32 %s45, 1
        %s104 = scalar_lea.sflag [#allocation4], %s103
        %s105 = sand.u32 %s45, 1
        %s106 = smul.addr %s105, 8
        %s107 = scalar_lea.vmem [#allocation5], %s106
        %v108 = vld [vmem:[#allocation2] sm:$0xff]
        %v109 = vadd.f32 %v108, 1.0
        %110 = vst [vmem:[%s107] sm:$0xff] %v109
        %s111 = sand.u32 %s45, 1
        %s112 = scalar_lea.sflag [#allocation4], %s111
        %s113 = sand.u32 %s45, 1
        %s114 = smul.addr %s113, 8
        %s115 = scalar_lea.vmem [#allocation5], %s114
        // Predicated region
        $region29: #{tpu_custom_call.1} parent=23 // pred_check
          %p116 = pneg %p55
        $region30: #{tpu_custom_call.1} parent=23 // pred_check_branch
          %118 = sbr.rel (%p116) target = $region32
        $region31: #{tpu_custom_call.1} parent=23 // pred_region
          %s120 = ssub.s32 128, 128
          %121 = vsyncadd %s112, %s120
          %s122 = smul.addr %s16, 128
          %s123 = scalar_lea.hbm %s1, %s122
          %s125 = sshll.u32 %s115, 4
          %s126 = int_to_ptr.vmem [resolvable:$true] %s125
          %128 = dma.vmem_to_hbm [thread:$0]  %s126, 128, %s123, %s112
        $region32: #{tpu_custom_call.1} parent=23 // pred_fallthru
          _
      $region24: #{tpu_custom_call.1} parent=5 // pred_fallthru
        _
      %p129 = scmp.le.s32.totalorder 2, %s11
      // Predicated region
      $region33: #{tpu_custom_call.1} parent=5 // pred_check
        %p130 = pneg %p129
      $region34: #{tpu_custom_call.1} parent=5 // pred_check_branch
        %132 = sbr.rel (%p130) target = $region36
      $region35: #{tpu_custom_call.1} parent=5 // pred_region
        %s133 = ssub.s32 %s11, 2
        // Predicated region
        $region37: #{tpu_custom_call.1} parent=35 // pred_check
          %p134 = pneg %p61
        $region38: #{tpu_custom_call.1} parent=35 // pred_check_branch
          %136 = sbr.rel (%p134) target = $region40
        $region39: #{tpu_custom_call.1} parent=35 // pred_region
          %s137 = sand.u32 %s46, 1
          %s138 = scalar_lea.sflag [#allocation4], %s137
          %s139 = sand.u32 %s46, 1
          %s140 = smul.addr %s139, 8
          %s141 = scalar_lea.vmem [#allocation5], %s140
          %142 = dma.done %s138, 128
        $region40: #{tpu_custom_call.1} parent=35 // pred_fallthru
          _
      $region36: #{tpu_custom_call.1} parent=5 // pred_fallthru
        _
    $region6: #{tpu_custom_call.1} parent=1 // loop_footer
      %s15 = sadd.s32 1, %s11
    $region7: #{tpu_custom_call.1} parent=1 // loop_footer_branch
      %10 = sbr.rel target = $region3
    $region8: #{tpu_custom_call.1} parent=1 // loop_exit
      _
    %143 = vsyncpa [#allocation3], 1
    %s144 = scalar_lea.sflag [#allocation3], 1
    %145 = vsyncpa %s144, 1
    %146 = vsyncpa [#allocation4], 1
    %s147 = scalar_lea.sflag [#allocation4], 1
    %148 = vsyncpa %s147, 1

// kernel: tpu_custom_call.1
$region0: #{tpu_custom_call.1}
  #allocation0 [shape = 'u32[]', space=smem, size = 0x4, offset = 0x4, fixed_abs, tag = 'smem constant byte address 0x4 - core index']
  #allocation1 [shape = 'u32[144,128]{1,0:T(1,128)}', space=vmem, size = 0x12000, scoped, tag = 'internal scratch']
  #allocation2 [shape = 'bf16[256,4]{1,0:T(16,128)(2,1)}', space=vmem, size = 0x10000, scoped, tag = 'scratch operand']
  #allocation3 [shape = 'f32[64,4]{1,0:T(8,128)}', space=vmem, size = 0x8000, scoped, tag = 'scratch operand']
  #allocation4 [shape = 'bf16[4,64]{1,0:T(4,128)(2,1)}', space=vmem, size = 0x400, scoped, tag = 'scratch operand']
  #allocation5 [shape = 'bf16[64,16]{1,0:T(16,128)(2,1)}', space=vmem, size = 0x4000, scoped, tag = 'scratch operand']
  %s0 = inlined_call_operand.vmem [shape: f32[2,256,32], index: 0, kind: input, shape index: {}]
  %s1 = inlined_call_operand.vmem [shape: bf16[32,24], index: 1, kind: input, shape index: {}]
  %s2 = inlined_call_operand.vmem [shape: bf16[16,32], index: 2, kind: input, shape index: {}]
  %s3 = inlined_call_operand.hbm [shape: f32[2,32,256], index: 3, kind: output, shape index: {}]
  %s4 = sld [smem:[#allocation0]]
  $region49: #{tpu_custom_call.1} parent=0
    _
  %s6 = ssub.s32 1, %s4
  %s7 = scalar_select 0, %s6, %s4
  $region1: #{tpu_custom_call.1} parent=0
    #allocation6 [shape = 'u8[65536]{0}', space=vmem, size = 0x10000, scoped, tag = 'output window, operand 0']
    #allocation7 [shape = 's32[2]{0}', space=sflag, size = 0x8, scoped, tag = 'scoped memory for tpu_custom_call.1']
    %8 = vsyncpa [#allocation7], 0
    %s9 = scalar_lea.sflag [#allocation7], 1
    %10 = vsyncpa %s9, 0
    loop: start=0, step=1, limit=4
    $region2: #{tpu_custom_call.1} parent=1 // loop_pre_header
      _
    $region3: #{tpu_custom_call.1} parent=1 // loop_header
      %s12 = sphi 0, %s16
      %p13 = scmp.ge.s32.totalorder %s12, 4
      %s19 = sphi 0, %s31
      %s20 = sphi 0, %s27
      %s21 = sphi 0, %s19
      %s22 = sphi 0, %s20
      %s23 = sphi 0, %s21
      %s24 = sphi 0, %s22
      %s34 = sphi 0, %s36
      %s37 = sphi 0, %s34
      %s38 = sphi 0, %s37
      %s54 = sphi 0, %s38
      %s58 = sphi 0, %s58
      %s60 = sphi 0, %s58
      %s61 = sphi 0, %s60
      %s75 = sphi 0, %s61
      %s79 = sphi 0, %s79
      %s81 = sphi 0, %s79
      %s82 = sphi 0, %s81
      %s96 = sphi 0, %s82
      %s104 = sphi 0, %s106
      %s107 = sphi 0, %s104
      %s108 = sphi 0, %s107
      %s124 = sphi 0, %s108
    $region4: #{tpu_custom_call.1} parent=1 // loop_header_branch
      %15 = sbr.rel (%p13) target = $region8
    $region5: #{tpu_custom_call.1} parent=1 // loop_body
      %s17 = ssub.s32 %s12, 1
      %s18 = ssub.s32 %s12, 2
      %s25 = sadd.s32 1, %s20
      %p26 = scmp.ge.s32.totalorder %s25, 1
      %s27 = scalar_select %p26, 0, %s25
      %s28 = sadd.s32 1, %s19
      %s29 = scalar_select %p26, %s28, %s19
      %p30 = scmp.ge.s32.totalorder %s29, 2
      %s31 = scalar_select %p30, 0, %s29
      %s32 = ssub.s32 %s19, %s31
      %p33 = scmp.eq.s32.totalorder %s32, 0
      %s35 = sadd.s32 %s34, 1
      %s36 = scalar_select %p33, %s34, %s35
      %p39 = pneg %p33
      %p40 = scmp.eq.s32.totalorder %s12, 1
      %p41 = por %p39, %p40
      %p42 = scmp.ne.s32.totalorder %s34, %s37
      %p43 = scmp.eq.s32.totalorder %s12, 0
      %p44 = por %p42, %p43
      %p45 = scmp.ne.s32.totalorder %s34, %s37
      %p46 = scmp.eq.s32.totalorder %s17, 1
      %p47 = por %p45, %p46
      %p48 = scmp.ne.s32.totalorder %s37, %s38
      %p49 = scmp.eq.s32.totalorder %s17, 0
      %p50 = por %p48, %p49
      %p51 = scmp.ne.s32.totalorder %s37, %s38
      %p52 = scmp.eq.s32.totalorder %s18, 1
      %p53 = por %p51, %p52
      %p55 = scmp.ne.s32.totalorder %s38, %s54
      %p56 = scmp.eq.s32.totalorder %s18, 0
      %p57 = por %p55, %p56
      %s59 = sadd.s32 %s58, 1
      %p62 = scmp.eq.s32.totalorder %s12, 1
      %p63 = scmp.ne.s32.totalorder %s58, %s60
      %p64 = scmp.eq.s32.totalorder %s12, 0
      %p65 = por %p63, %p64
      %p66 = scmp.ne.s32.totalorder %s58, %s60
      %p67 = scmp.eq.s32.totalorder %s17, 1
      %p68 = por %p66, %p67
      %p69 = scmp.ne.s32.totalorder %s60, %s61
      %p70 = scmp.eq.s32.totalorder %s17, 0
      %p71 = por %p69, %p70
      %p72 = scmp.ne.s32.totalorder %s60, %s61
      %p73 = scmp.eq.s32.totalorder %s18, 1
      %p74 = por %p72, %p73
      %p76 = scmp.ne.s32.totalorder %s61, %s75
      %p77 = scmp.eq.s32.totalorder %s18, 0
      %p78 = por %p76, %p77
      %s80 = sadd.s32 %s79, 1
      %p83 = scmp.eq.s32.totalorder %s12, 1
      %p84 = scmp.ne.s32.totalorder %s79, %s81
      %p85 = scmp.eq.s32.totalorder %s12, 0
      %p86 = por %p84, %p85
      %p87 = scmp.ne.s32.totalorder %s79, %s81
      %p88 = scmp.eq.s32.totalorder %s17, 1
      %p89 = por %p87, %p88
      %p90 = scmp.ne.s32.totalorder %s81, %s82
      %p91 = scmp.eq.s32.totalorder %s17, 0
      %p92 = por %p90, %p91
      %p93 = scmp.ne.s32.totalorder %s81, %s82
      %p94 = scmp.eq.s32.totalorder %s18, 1
      %p95 = por %p93, %p94
      %p97 = scmp.ne.s32.totalorder %s82, %s96
      %p98 = scmp.eq.s32.totalorder %s18, 0
      %p99 = por %p97, %p98
      %s100 = ssub.s32 %s19, %s31
      %s101 = ssub.s32 %s20, %s27
      %s102 = sor.u32 %s100, %s101
      %p103 = scmp.eq.s32.totalorder %s102, 0
      %s105 = sadd.s32 %s104, 1
      %s106 = scalar_select %p103, %s104, %s105
      %p109 = pneg %p103
      %p110 = scmp.eq.s32.totalorder %s12, 1
      %p111 = por %p109, %p110
      %p112 = scmp.ne.s32.totalorder %s104, %s107
      %p113 = scmp.eq.s32.totalorder %s12, 0
      %p114 = por %p112, %p113
      %p115 = scmp.ne.s32.totalorder %s104, %s107
      %p116 = scmp.eq.s32.totalorder %s17, 1
      %p117 = por %p115, %p116
      %p118 = scmp.ne.s32.totalorder %s107, %s108
      %p119 = scmp.eq.s32.totalorder %s17, 0
      %p120 = por %p118, %p119
      %p121 = scmp.ne.s32.totalorder %s107, %s108
      %p122 = scmp.eq.s32.totalorder %s18, 1
      %p123 = por %p121, %p122
      %p125 = scmp.ne.s32.totalorder %s108, %s124
      %p126 = scmp.eq.s32.totalorder %s18, 0
      %p127 = por %p125, %p126
      %p128 = scmp.le.s32.totalorder 1, %s12
      %p129 = scmp.lt.s32.totalorder %s12, 3
      %p130 = pnand %p128, %p129
      %p131 = pneg %p130
      // Predicated region
      $region9: #{tpu_custom_call.1} parent=5 // pred_check
        _
      $region10: #{tpu_custom_call.1} parent=5 // pred_check_branch
        %133 = sbr.rel (%p130) target = $region12
      $region11: #{tpu_custom_call.1} parent=5 // pred_region
        %s134 = ssub.s32 %s12, 1
        // Predicated region
        $region13: #{tpu_custom_call.1} parent=11 // pred_check
          %p135 = pneg %p71
        $region14: #{tpu_custom_call.1} parent=11 // pred_check_branch
          %137 = sbr.rel (%p135) target = $region16
        $region15: #{tpu_custom_call.1} parent=11 // pred_region
          _
        $region16: #{tpu_custom_call.1} parent=11 // pred_fallthru
          _
        // Predicated region
        $region17: #{tpu_custom_call.1} parent=11 // pred_check
          %p138 = pneg %p92
        $region18: #{tpu_custom_call.1} parent=11 // pred_check_branch
          %140 = sbr.rel (%p138) target = $region20
        $region19: #{tpu_custom_call.1} parent=11 // pred_region
          _
        $region20: #{tpu_custom_call.1} parent=11 // pred_fallthru
          _
      $region12: #{tpu_custom_call.1} parent=5 // pred_fallthru
        _
      %p141 = scmp.lt.s32.totalorder %s12, 2
      // Predicated region
      $region21: #{tpu_custom_call.1} parent=5 // pred_check
        %p142 = pneg %p141
      $region22: #{tpu_custom_call.1} parent=5 // pred_check_branch
        %144 = sbr.rel (%p142) target = $region24
      $region23: #{tpu_custom_call.1} parent=5 // pred_region
        // Predicated region
        $region25: #{tpu_custom_call.1} parent=23 // pred_check
          %p145 = pneg %p44
        $region26: #{tpu_custom_call.1} parent=23 // pred_check_branch
          %147 = sbr.rel (%p145) target = $region28
        $region27: #{tpu_custom_call.1} parent=23 // pred_region
          %p148 = scmp.lt.s32.totalorder %s19, 1
          %s149 = scalar_select %p148, %s19, 1
          %s150 = smul.addr %s149, 32
          %s151 = smul.addr %s150, 8
          %s152 = scalar_lea.vmem %s0, %s151
        $region28: #{tpu_custom_call.1} parent=23 // pred_fallthru
          _
      $region24: #{tpu_custom_call.1} parent=5 // pred_fallthru
        _
      %p153 = scmp.le.s32.totalorder 1, %s12
      %p154 = scmp.lt.s32.totalorder %s12, 3
      %p155 = pnand %p153, %p154
      %p156 = pneg %p155
      // Predicated region
      $region29: #{tpu_custom_call.1} parent=5 // pred_check
        _
      $region30: #{tpu_custom_call.1} parent=5 // pred_check_branch
        %158 = sbr.rel (%p155) target = $region32
      $region31: #{tpu_custom_call.1} parent=5 // pred_region
        %s159 = ssub.s32 %s12, 1
        %p160 = scmp.lt.s32.totalorder %s21, 1
        %s161 = scalar_select %p160, %s21, 1
        %s162 = smul.addr %s161, 32
        %s163 = smul.addr %s162, 8
        %s164 = scalar_lea.vmem %s0, %s163
        %p165 = pneg %p50
        %p166 = pneg %p47
        %p167 = pneg %p71
        %p168 = pneg %p68
        %p169 = pneg %p92
        %p170 = pneg %p89
        %p171 = pneg %p120
        %p172 = pneg %p117
        %s173 = sand.u32 %s107, 1
        %s174 = scalar_lea.sflag [#allocation7], %s173
        %s175 = sand.u32 %s107, 1
        %s176 = smul.addr %s175, 64
        %s177 = scalar_lea.vmem [#allocation6], %s176
        %p178 = scmp.lt.s32.totalorder %s21, 1
        %s179 = scalar_select %p178, %s21, 1
        %s180 = smul.addr %s179, 32
        %s181 = smul.addr %s180, 8
        %s182 = scalar_lea.vmem %s0, %s181
        %s183 = smul.u32 2, %s22
        %p185 = scmp.eq.s32.totalorder %s22, 0
        // Predicated region
        $region33: #{tpu_custom_call.1} parent=31 // pred_check
          %p186 = pneg %p185
        $region34: #{tpu_custom_call.1} parent=31 // pred_check_branch
          %188 = sbr.rel (%p186) target = $region36
        $region35: #{tpu_custom_call.1} parent=31 // pred_region
          %v189 = vld [vmem:[%s1] sm:$0xf]
          %v190 = vld [vmem:[%s1 + $0x4] sm:$0xf]
          %v191 = vld [vmem:[%s1 + $0x8] sm:$0xf]
          %v192 = vld [vmem:[%s1 + $0xc] sm:$0xf]
          %v193 = vld [vmem:[%s182] sm:$0xff]
          %v194 = vld [vmem:[%s182 + $0x8] sm:$0xff]
          %v195 = vld [vmem:[%s182 + $0x10] sm:$0xff]
          %v196 = vld [vmem:[%s182 + $0x18] sm:$0xff]
          %v197 = vld [vmem:[%s182 + $0x20] sm:$0xff]
          %v198 = vld [vmem:[%s182 + $0x28] sm:$0xff]
          %v199 = vld [vmem:[%s182 + $0x30] sm:$0xff]
          %v200 = vld [vmem:[%s182 + $0x38] sm:$0xff]
          %v201 = vpack.c.bf16 %v194, %v193
          %v202 = vpack.c.bf16 %v196, %v195
          %v203 = vpack.c.bf16 %v198, %v197
          %v204 = vpack.c.bf16 %v200, %v199
          %v209 = vunpack.c.l.b16 %v189
          %v210 = vunpack.c.l.b16 %v190
          %v211 = vunpack.c.l.b16 %v191
          %v212 = vunpack.c.l.b16 %v192
          %v213 = vpack.c.b16 %v210, %v209
          %v214 = vpack.c.b16 %v212, %v211
          %vm217 = vcmask 261120
          %v219 = vsel %vm217, %v201, 0
          %v222 = vsel %vm217, %v202, 0
          %v225 = vsel %vm217, %v203, 0
          %v228 = vsel %vm217, %v204, 0
          %230 = vmatprep.subr.bf16.mxu0 0
          %231 = vmatpush1.bf16.msra.mxu0 %v213
          %232 = vmatprep.subr.bf16.mxu0 0
          %233 = vmatpush1.bf16.msra.mxu0 %v214
          %234 = vmatprep.subr.bf16.mxu0 0
          %235 = vmatpush1.bf16.msra.mxu0 0
          %236 = vmatprep.subr.bf16.mxu0 0
          %237 = vmatpush1.bf16.msra.mxu0 0
          %238 = vmatprep.subr.bf16.mxu0 0
          %239 = vmatpush1.bf16.msra.mxu0 0
          %240 = vmatprep.subr.bf16.mxu0 0
          %241 = vmatpush1.bf16.msra.mxu0 0
          %242 = vmatprep.subr.bf16.mxu0 0
          %243 = vmatpush1.bf16.msra.mxu0 0
          %244 = vmatprep.subr.bf16.mxu0 0
          %245 = vmatpush1.bf16.msra.mxu0 0
          %246 = vmatprep.subr.bf16.mxu0 0
          %247 = vmatpush1.bf16.msra.mxu0 0
          %248 = vmatprep.subr.bf16.mxu0 0
          %249 = vmatpush1.bf16.msra.mxu0 0
          %250 = vmatprep.subr.bf16.mxu0 0
          %251 = vmatpush1.bf16.msra.mxu0 0
          %252 = vmatprep.subr.bf16.mxu0 0
          %253 = vmatpush1.bf16.msra.mxu0 0
          %254 = vmatprep.subr.bf16.mxu0 0
          %255 = vmatpush1.bf16.msra.mxu0 0
          %256 = vmatprep.subr.bf16.mxu0 0
          %257 = vmatpush1.bf16.msra.mxu0 0
          %258 = vmatprep.subr.bf16.mxu0 0
          %259 = vmatpush1.bf16.msra.mxu0 0
          %260 = vmatprep.subr.bf16.mxu0 0
          %261 = vmatpush1.bf16.msra.mxu0 0
          %262 = vmatprep.mubr.bf16.mxu0 0
          %263 = vmatmul.mubr.bf16.gmra.mrb[0].mxu0 %v219
          %v264 = vpop.f32.mrb[0].mxu0
          %v265 = vadd.f32 0.0, %v264
          %v266 = vpop.f32.mrb[0].mxu0
          %v267 = vpop.f32.mrb[0].mxu0
          %v268 = vadd.f32 0.0, %v267
          %v269 = vpop.f32.mrb[0].mxu0
          %270 = vmatprep.mubr.bf16.mxu0 0
          %271 = vmatmul.mubr.bf16.gmra.mrb[0].mxu0 %v222
          %v272 = vpop.f32.mrb[0].mxu0
          %v273 = vadd.f32 0.0, %v272
          %v274 = vpop.f32.mrb[0].mxu0
          %v275 = vpop.f32.mrb[0].mxu0
          %v276 = vadd.f32 0.0, %v275
          %v277 = vpop.f32.mrb[0].mxu0
          %278 = vmatprep.mubr.bf16.mxu0 0
          %279 = vmatmul.mubr.bf16.gmra.mrb[0].mxu0 %v225
          %v280 = vpop.f32.mrb[0].mxu0
          %v281 = vadd.f32 0.0, %v280
          %v282 = vpop.f32.mrb[0].mxu0
          %v283 = vpop.f32.mrb[0].mxu0
          %v284 = vadd.f32 0.0, %v283
          %v285 = vpop.f32.mrb[0].mxu0
          %286 = vmatprep.mubr.bf16.mxu0 0
          %287 = vmatmul.mubr.bf16.gmra.mrb[0].mxu0 %v228
          %v288 = vpop.f32.mrb[0].mxu0
          %v289 = vadd.f32 0.0, %v288
          %v290 = vpop.f32.mrb[0].mxu0
          %v291 = vpop.f32.mrb[0].mxu0
          %v292 = vadd.f32 0.0, %v291
          %v293 = vpop.f32.mrb[0].mxu0
          %294 = vdwg.mxu0
          %v295 = vld [vmem:[%s182 + $0x40] sm:$0xff]
          %v296 = vld [vmem:[%s182 + $0x48] sm:$0xff]
          %v297 = vld [vmem:[%s182 + $0x50] sm:$0xff]
          %v298 = vld [vmem:[%s182 + $0x58] sm:$0xff]
          %v299 = vld [vmem:[%s182 + $0x60] sm:$0xff]
          %v300 = vld [vmem:[%s182 + $0x68] sm:$0xff]
          %v301 = vld [vmem:[%s182 + $0x70] sm:$0xff]
          %v302 = vld [vmem:[%s182 + $0x78] sm:$0xff]
          %v303 = vpack.c.bf16 %v296, %v295
          %v304 = vpack.c.bf16 %v298, %v297
          %v305 = vpack.c.bf16 %v300, %v299
          %v306 = vpack.c.bf16 %v302, %v301
          %v308 = vsel %vm217, %v303, 0
          %v311 = vsel %vm217, %v304, 0
          %v314 = vsel %vm217, %v305, 0
          %v317 = vsel %vm217, %v306, 0
          %319 = vmatprep.subr.bf16.mxu0 0
          %320 = vmatpush1.bf16.msra.mxu0 %v213
          %321 = vmatprep.subr.bf16.mxu0 0
          %322 = vmatpush1.bf16.msra.mxu0 %v214
          %323 = vmatprep.subr.bf16.mxu0 0
          %324 = vmatpush1.bf16.msra.mxu0 0
          %325 = vmatprep.subr.bf16.mxu0 0
          %326 = vmatpush1.bf16.msra.mxu0 0
          %327 = vmatprep.subr.bf16.mxu0 0
          %328 = vmatpush1.bf16.msra.mxu0 0
          %329 = vmatprep.subr.bf16.mxu0 0
          %330 = vmatpush1.bf16.msra.mxu0 0
          %331 = vmatprep.subr.bf16.mxu0 0
          %332 = vmatpush1.bf16.msra.mxu0 0
          %333 = vmatprep.subr.bf16.mxu0 0
          %334 = vmatpush1.bf16.msra.mxu0 0
          %335 = vmatprep.subr.bf16.mxu0 0
          %336 = vmatpush1.bf16.msra.mxu0 0
          %337 = vmatprep.subr.bf16.mxu0 0
          %338 = vmatpush1.bf16.msra.mxu0 0
          %339 = vmatprep.subr.bf16.mxu0 0
          %340 = vmatpush1.bf16.msra.mxu0 0
          %341 = vmatprep.subr.bf16.mxu0 0
          %342 = vmatpush1.bf16.msra.mxu0 0
          %343 = vmatprep.subr.bf16.mxu0 0
          %344 = vmatpush1.bf16.msra.mxu0 0
          %345 = vmatprep.subr.bf16.mxu0 0
          %346 = vmatpush1.bf16.msra.mxu0 0
          %347 = vmatprep.subr.bf16.mxu0 0
          %348 = vmatpush1.bf16.msra.mxu0 0
          %349 = vmatprep.subr.bf16.mxu0 0
          %350 = vmatpush1.bf16.msra.mxu0 0
          %351 = vmatprep.mubr.bf16.mxu0 0
          %352 = vmatmul.mubr.bf16.gmra.mrb[0].mxu0 %v308
          %v353 = vpop.f32.mrb[0].mxu0
          %v354 = vadd.f32 0.0, %v353
          %v355 = vpop.f32.mrb[0].mxu0
          %v356 = vpop.f32.mrb[0].mxu0
          %v357 = vadd.f32 0.0, %v356
          %v358 = vpop.f32.mrb[0].mxu0
          %359 = vmatprep.mubr.bf16.mxu0 0
          %360 = vmatmul.mubr.bf16.gmra.mrb[0].mxu0 %v311
          %v361 = vpop.f32.mrb[0].mxu0
          %v362 = vadd.f32 0.0, %v361
          %v363 = vpop.f32.mrb[0].mxu0
          %v364 = vpop.f32.mrb[0].mxu0
          %v365 = vadd.f32 0.0, %v364
          %v366 = vpop.f32.mrb[0].mxu0
          %367 = vmatprep.mubr.bf16.mxu0 0
          %368 = vmatmul.mubr.bf16.gmra.mrb[0].mxu0 %v314
          %v369 = vpop.f32.mrb[0].mxu0
          %v370 = vadd.f32 0.0, %v369
          %v371 = vpop.f32.mrb[0].mxu0
          %v372 = vpop.f32.mrb[0].mxu0
          %v373 = vadd.f32 0.0, %v372
          %v374 = vpop.f32.mrb[0].mxu0
          %375 = vmatprep.mubr.bf16.mxu0 0
          %376 = vmatmul.mubr.bf16.gmra.mrb[0].mxu0 %v317
          %v377 = vpop.f32.mrb[0].mxu0
          %v378 = vadd.f32 0.0, %v377
          %v379 = vpop.f32.mrb[0].mxu0
          %v380 = vpop.f32.mrb[0].mxu0
          %v381 = vadd.f32 0.0, %v380
          %v382 = vpop.f32.mrb[0].mxu0
          %383 = vdwg.mxu0
          %v384 = vld [vmem:[%s182 + $0x80] sm:$0xff]
          %v385 = vld [vmem:[%s182 + $0x88] sm:$0xff]
          %v386 = vld [vmem:[%s182 + $0x90] sm:$0xff]
          %v387 = vld [vmem:[%s182 + $0x98] sm:$0xff]
          %v388 = vld [vmem:[%s182 + $0xa0] sm:$0xff]
          %v389 = vld [vmem:[%s182 + $0xa8] sm:$0xff]
          %v390 = vld [vmem:[%s182 + $0xb0] sm:$0xff]
          %v391 = vld [vmem:[%s182 + $0xb8] sm:$0xff]
          %v392 = vpack.c.bf16 %v385, %v384
          %v393 = vpack.c.bf16 %v387, %v386
          %v394 = vpack.c.bf16 %v389, %v388
          %v395 = vpack.c.bf16 %v391, %v390
          %v397 = vsel %vm217, %v392, 0
          %v400 = vsel %vm217, %v393, 0
          %v403 = vsel %vm217, %v394, 0
          %v406 = vsel %vm217, %v395, 0
          %408 = vmatprep.subr.bf16.mxu0 0
          %409 = vmatpush1.bf16.msra.mxu0 %v213
          %410 = vmatprep.subr.bf16.mxu0 0
          %411 = vmatpush1.bf16.msra.mxu0 %v214
          %412 = vmatprep.subr.bf16.mxu0 0
          %413 = vmatpush1.bf16.msra.mxu0 0
          %414 = vmatprep.subr.bf16.mxu0 0
          %415 = vmatpush1.bf16.msra.mxu0 0
          %416 = vmatprep.subr.bf16.mxu0 0
          %417 = vmatpush1.bf16.msra.mxu0 0
          %418 = vmatprep.subr.bf16.mxu0 0
          %419 = vmatpush1.bf16.msra.mxu0 0
          %420 = vmatprep.subr.bf16.mxu0 0
          %421 = vmatpush1.bf16.msra.mxu0 0
          %422 = vmatprep.subr.bf16.mxu0 0
          %423 = vmatpush1.bf16.msra.mxu0 0
          %424 = vmatprep.subr.bf16.mxu0 0
          %425 = vmatpush1.bf16.msra.mxu0 0
          %426 = vmatprep.subr.bf16.mxu0 0
          %427 = vmatpush1.bf16.msra.mxu0 0
          %428 = vmatprep.subr.bf16.mxu0 0
          %429 = vmatpush1.bf16.msra.mxu0 0
          %430 = vmatprep.subr.bf16.mxu0 0
          %431 = vmatpush1.bf16.msra.mxu0 0
          %432 = vmatprep.subr.bf16.mxu0 0
          %433 = vmatpush1.bf16.msra.mxu0 0
          %434 = vmatprep.subr.bf16.mxu0 0
          %435 = vmatpush1.bf16.msra.mxu0 0
          %436 = vmatprep.subr.bf16.mxu0 0
          %437 = vmatpush1.bf16.msra.mxu0 0
          %438 = vmatprep.subr.bf16.mxu0 0
          %439 = vmatpush1.bf16.msra.mxu0 0
          %440 = vmatprep.mubr.bf16.mxu0 0
          %441 = vmatmul.mubr.bf16.gmra.mrb[0].mxu0 %v397
          %v442 = vpop.f32.mrb[0].mxu0
          %v443 = vadd.f32 0.0, %v442
          %v444 = vpop.f32.mrb[0].mxu0
          %v445 = vpop.f32.mrb[0].mxu0
          %v446 = vadd.f32 0.0, %v445
          %v447 = vpop.f32.mrb[0].mxu0
          %448 = vmatprep.mubr.bf16.mxu0 0
          %449 = vmatmul.mubr.bf16.gmra.mrb[0].mxu0 %v400
          %v450 = vpop.f32.mrb[0].mxu0
          %v451 = vadd.f32 0.0, %v450
          %v452 = vpop.f32.mrb[0].mxu0
          %v453 = vpop.f32.mrb[0].mxu0
          %v454 = vadd.f32 0.0, %v453
          %v455 = vpop.f32.mrb[0].mxu0
          %456 = vmatprep.mubr.bf16.mxu0 0
          %457 = vmatmul.mubr.bf16.gmra.mrb[0].mxu0 %v403
          %v458 = vpop.f32.mrb[0].mxu0
          %v459 = vadd.f32 0.0, %v458
          %v460 = vpop.f32.mrb[0].mxu0
          %v461 = vpop.f32.mrb[0].mxu0
          %v462 = vadd.f32 0.0, %v461
          %v463 = vpop.f32.mrb[0].mxu0
          %464 = vmatprep.mubr.bf16.mxu0 0
          %465 = vmatmul.mubr.bf16.gmra.mrb[0].mxu0 %v406
          %v466 = vpop.f32.mrb[0].mxu0
          %v467 = vadd.f32 0.0, %v466
          %v468 = vpop.f32.mrb[0].mxu0
          %v469 = vpop.f32.mrb[0].mxu0
          %v470 = vadd.f32 0.0, %v469
          %v471 = vpop.f32.mrb[0].mxu0
          %472 = vdwg.mxu0
          %v473 = vld [vmem:[%s182 + $0xc0] sm:$0xff]
          %v474 = vld [vmem:[%s182 + $0xc8] sm:$0xff]
          %v475 = vld [vmem:[%s182 + $0xd0] sm:$0xff]
          %v476 = vld [vmem:[%s182 + $0xd8] sm:$0xff]
          %v477 = vld [vmem:[%s182 + $0xe0] sm:$0xff]
          %v478 = vld [vmem:[%s182 + $0xe8] sm:$0xff]
          %v479 = vld [vmem:[%s182 + $0xf0] sm:$0xff]
          %v480 = vld [vmem:[%s182 + $0xf8] sm:$0xff]
          %v481 = vpack.c.bf16 %v474, %v473
          %v482 = vpack.c.bf16 %v476, %v475
          %v483 = vpack.c.bf16 %v478, %v477
          %v484 = vpack.c.bf16 %v480, %v479
          %v486 = vsel %vm217, %v481, 0
          %v489 = vsel %vm217, %v482, 0
          %v492 = vsel %vm217, %v483, 0
          %v495 = vsel %vm217, %v484, 0
          %497 = vmatprep.subr.bf16.mxu0 0
          %498 = vmatpush1.bf16.msra.mxu0 %v213
          %499 = vmatprep.subr.bf16.mxu0 0
          %500 = vmatpush1.bf16.msra.mxu0 %v214
          %501 = vmatprep.subr.bf16.mxu0 0
          %502 = vmatpush1.bf16.msra.mxu0 0
          %503 = vmatprep.subr.bf16.mxu0 0
          %504 = vmatpush1.bf16.msra.mxu0 0
          %505 = vmatprep.subr.bf16.mxu0 0
          %506 = vmatpush1.bf16.msra.mxu0 0
          %507 = vmatprep.subr.bf16.mxu0 0
          %508 = vmatpush1.bf16.msra.mxu0 0
          %509 = vmatprep.subr.bf16.mxu0 0
          %510 = vmatpush1.bf16.msra.mxu0 0
          %511 = vmatprep.subr.bf16.mxu0 0
          %512 = vmatpush1.bf16.msra.mxu0 0
          %513 = vmatprep.subr.bf16.mxu0 0
          %514 = vmatpush1.bf16.msra.mxu0 0
          %515 = vmatprep.subr.bf16.mxu0 0
          %516 = vmatpush1.bf16.msra.mxu0 0
          %517 = vmatprep.subr.bf16.mxu0 0
          %518 = vmatpush1.bf16.msra.mxu0 0
          %519 = vmatprep.subr.bf16.mxu0 0
          %520 = vmatpush1.bf16.msra.mxu0 0
          %521 = vmatprep.subr.bf16.mxu0 0
          %522 = vmatpush1.bf16.msra.mxu0 0
          %523 = vmatprep.subr.bf16.mxu0 0
          %524 = vmatpush1.bf16.msra.mxu0 0
          %525 = vmatprep.subr.bf16.mxu0 0
          %526 = vmatpush1.bf16.msra.mxu0 0
          %527 = vmatprep.subr.bf16.mxu0 0
          %528 = vmatpush1.bf16.msra.mxu0 0
          %529 = vmatprep.mubr.bf16.mxu0 0
          %530 = vmatmul.mubr.bf16.gmra.mrb[0].mxu0 %v486
          %v531 = vpop.f32.mrb[0].mxu0
          %v532 = vadd.f32 0.0, %v531
          %v533 = vpop.f32.mrb[0].mxu0
          %v534 = vpop.f32.mrb[0].mxu0
          %v535 = vadd.f32 0.0, %v534
          %v536 = vpop.f32.mrb[0].mxu0
          %537 = vmatprep.mubr.bf16.mxu0 0
          %538 = vmatmul.mubr.bf16.gmra.mrb[0].mxu0 %v489
          %v539 = vpop.f32.mrb[0].mxu0
          %v540 = vadd.f32 0.0, %v539
          %v541 = vpop.f32.mrb[0].mxu0
          %v542 = vpop.f32.mrb[0].mxu0
          %v543 = vadd.f32 0.0, %v542
          %v544 = vpop.f32.mrb[0].mxu0
          %545 = vmatprep.mubr.bf16.mxu0 0
          %546 = vmatmul.mubr.bf16.gmra.mrb[0].mxu0 %v492
          %v547 = vpop.f32.mrb[0].mxu0
          %v548 = vadd.f32 0.0, %v547
          %v549 = vpop.f32.mrb[0].mxu0
          %v550 = vpop.f32.mrb[0].mxu0
          %v551 = vadd.f32 0.0, %v550
          %v552 = vpop.f32.mrb[0].mxu0
          %553 = vmatprep.mubr.bf16.mxu0 0
          %554 = vmatmul.mubr.bf16.gmra.mrb[0].mxu0 %v495
          %v555 = vpop.f32.mrb[0].mxu0
          %v556 = vadd.f32 0.0, %v555
          %v557 = vpop.f32.mrb[0].mxu0
          %v558 = vpop.f32.mrb[0].mxu0
          %v559 = vadd.f32 0.0, %v558
          %v560 = vpop.f32.mrb[0].mxu0
          %561 = vdwg.mxu0
          %v562 = vpack.c.bf16 %v268, %v265
          %v563 = vpack.c.bf16 %v276, %v273
          %v564 = vpack.c.bf16 %v284, %v281
          %v565 = vpack.c.bf16 %v292, %v289
          %vm566 = vcmask 31744
          %567 = vst.msk [vmem:[#allocation2] sm:$0xff] %vm566, %v562
          %568 = vst.msk [vmem:[#allocation2 + $0x8] sm:$0xff] %vm566, %v563
          %569 = vst.msk [vmem:[#allocation2 + $0x10] sm:$0xff] %vm566, %v564
          %570 = vst.msk [vmem:[#allocation2 + $0x18] sm:$0xff] %vm566, %v565
          %v571 = vpack.c.bf16 %v357, %v354
          %v572 = vpack.c.bf16 %v365, %v362
          %v573 = vpack.c.bf16 %v373, %v370
          %v574 = vpack.c.bf16 %v381, %v378
          %575 = vst.msk [vmem:[#allocation2 + $0x20] sm:$0xff] %vm566, %v571
          %576 = vst.msk [vmem:[#allocation2 + $0x28] sm:$0xff] %vm566, %v572
          %577 = vst.msk [vmem:[#allocation2 + $0x30] sm:$0xff] %vm566, %v573
          %578 = vst.msk [vmem:[#allocation2 + $0x38] sm:$0xff] %vm566, %v574
          %v579 = vpack.c.bf16 %v446, %v443
          %v580 = vpack.c.bf16 %v454, %v451
          %v581 = vpack.c.bf16 %v462, %v459
          %v582 = vpack.c.bf16 %v470, %v467
          %583 = vst.msk [vmem:[#allocation2 + $0x40] sm:$0xff] %vm566, %v579
          %584 = vst.msk [vmem:[#allocation2 + $0x48] sm:$0xff] %vm566, %v580
          %585 = vst.msk [vmem:[#allocation2 + $0x50] sm:$0xff] %vm566, %v581
          %586 = vst.msk [vmem:[#allocation2 + $0x58] sm:$0xff] %vm566, %v582
          %v587 = vpack.c.bf16 %v535, %v532
          %v588 = vpack.c.bf16 %v543, %v540
          %v589 = vpack.c.bf16 %v551, %v548
          %v590 = vpack.c.bf16 %v559, %v556
          %591 = vst.msk [vmem:[#allocation2 + $0x60] sm:$0xff] %vm566, %v587
          %592 = vst.msk [vmem:[#allocation2 + $0x68] sm:$0xff] %vm566, %v588
          %593 = vst.msk [vmem:[#allocation2 + $0x70] sm:$0xff] %vm566, %v589
          %594 = vst.msk [vmem:[#allocation2 + $0x78] sm:$0xff] %vm566, %v590
          %v595 = vmax.f32 %v265, %v354
          %v596 = vmax.f32 %v268, %v357
          %v597 = vmax.f32 %v273, %v362
          %v598 = vmax.f32 %v276, %v365
          %v599 = vmax.f32 %v281, %v370
          %v600 = vmax.f32 %v284, %v373
          %v601 = vmax.f32 %v289, %v378
          %v602 = vmax.f32 %v292, %v381
          %v603 = vmax.f32 %v443, %v532
          %v604 = vmax.f32 %v446, %v535
          %v605 = vmax.f32 %v451, %v540
          %v606 = vmax.f32 %v454, %v543
          %v607 = vmax.f32 %v459, %v548
          %v608 = vmax.f32 %v462, %v551
          %v609 = vmax.f32 %v467, %v556
          %v610 = vmax.f32 %v470, %v559
          %v611 = vmax.f32 %v595, %v603
          %v612 = vmax.f32 %v596, %v604
          %v613 = vmax.f32 %v597, %v605
          %v614 = vmax.f32 %v598, %v606
          %v615 = vmax.f32 %v599, %v607
          %v616 = vmax.f32 %v600, %v608
          %v617 = vmax.f32 %v601, %v609
          %v618 = vmax.f32 %v602, %v610
          %627 = vrot.lane.b32.xlu0 %v611, 124
          %v628 = vpop.permute.xlu0 %627
          %629 = vrot.lane.b32.xlu0 %v612, 124
          %v630 = vpop.permute.xlu0 %629
          %631 = vrot.lane.b32.xlu0 %v613, 124
          %v632 = vpop.permute.xlu0 %631
          %633 = vrot.lane.b32.xlu0 %v614, 124
          %v634 = vpop.permute.xlu0 %633
          %635 = vrot.lane.b32.xlu0 %v615, 124
          %v636 = vpop.permute.xlu0 %635
          %637 = vrot.lane.b32.xlu0 %v616, 124
          %v638 = vpop.permute.xlu0 %637
          %639 = vrot.lane.b32.xlu0 %v617, 124
          %v640 = vpop.permute.xlu0 %639
          %641 = vrot.lane.b32.xlu0 %v618, 124
          %v642 = vpop.permute.xlu0 %641
          %651 = vst.msk [vmem:[#allocation3] sm:$0xff] %vm566, %v628
          %652 = vst.msk [vmem:[#allocation3 + $0x8] sm:$0xff] %vm566, %v630
          %653 = vst.msk [vmem:[#allocation3 + $0x10] sm:$0xff] %vm566, %v632
          %654 = vst.msk [vmem:[#allocation3 + $0x18] sm:$0xff] %vm566, %v634
          %655 = vst.msk [vmem:[#allocation3 + $0x20] sm:$0xff] %vm566, %v636
          %656 = vst.msk [vmem:[#allocation3 + $0x28] sm:$0xff] %vm566, %v638
          %657 = vst.msk [vmem:[#allocation3 + $0x30] sm:$0xff] %vm566, %v640
          %658 = vst.msk [vmem:[#allocation3 + $0x38] sm:$0xff] %vm566, %v642
          %v659 = vpack.c.bf16 %v612, %v611
          %v660 = vpack.c.bf16 %v614, %v613
          %v661 = vpack.c.bf16 %v616, %v615
          %v662 = vpack.c.bf16 %v618, %v617
          %667 = vrot.lane.b32.xlu0 %v659, 120
          %v668 = vpop.permute.xlu0 %667
          %669 = vrot.lane.b32.xlu0 %v660, 120
          %v670 = vpop.permute.xlu0 %669
          %671 = vrot.lane.b32.xlu0 %v661, 120
          %v672 = vpop.permute.xlu0 %671
          %673 = vrot.lane.b32.xlu0 %v662, 120
          %v674 = vpop.permute.xlu0 %673
          %vm679 = vcmask 130048
          %680 = vst.msk [vmem:[#allocation5] sm:$0xff] %vm679, %v668
          %681 = vst.msk [vmem:[#allocation5 + $0x8] sm:$0xff] %vm679, %v670
          %682 = vst.msk [vmem:[#allocation5 + $0x10] sm:$0xff] %vm679, %v672
          %683 = vst.msk [vmem:[#allocation5 + $0x18] sm:$0xff] %vm679, %v674
          %v684 = vld [vmem:[#allocation3] sm:$0xff]
          %v685 = vld [vmem:[#allocation3 + $0x8] sm:$0xff]
          %v686 = vld [vmem:[#allocation3 + $0x10] sm:$0xff]
          %v687 = vld [vmem:[#allocation3 + $0x18] sm:$0xff]
          %v688 = vld [vmem:[#allocation3 + $0x20] sm:$0xff]
          %v689 = vld [vmem:[#allocation3 + $0x28] sm:$0xff]
          %v690 = vld [vmem:[#allocation3 + $0x30] sm:$0xff]
          %v691 = vld [vmem:[#allocation3 + $0x38] sm:$0xff]
          %692 = vxpose.xlu0.b32.start [1/16] %v684, 128
          %693 = vxpose.xlu0.b32.cont [2/16] %v685, 128
          %694 = vxpose.xlu0.b32.cont [3/16] %v686, 128
          %695 = vxpose.xlu0.b32.cont [4/16] %v687, 128
          %696 = vxpose.xlu0.b32.cont [5/16] %v688, 128
          %697 = vxpose.xlu0.b32.cont [6/16] %v689, 128
          %698 = vxpose.xlu0.b32.cont [7/16] %v690, 128
          %699 = vxpose.xlu0.b32.cont [8/16] %v691, 128
          %700 = vxpose.xlu0.b32.cont [9/16] 0.0, 128
          %701 = vxpose.xlu0.b32.cont [10/16] 0.0, 128
          %702 = vxpose.xlu0.b32.cont [11/16] 0.0, 128
          %703 = vxpose.xlu0.b32.cont [12/16] 0.0, 128
          %704 = vxpose.xlu0.b32.cont [13/16] 0.0, 128
          %705 = vxpose.xlu0.b32.cont [14/16] 0.0, 128
          %706 = vxpose.xlu0.b32.cont [15/16] 0.0, 128
          %707 = vxpose.xlu0.b32.end [16/16] 0.0, 128
          %v708 = vpop.trf.xlu0
          %v709 = vpop.trf.xlu0
          %v710 = vpop.trf.xlu0
          %v711 = vpop.trf.xlu0
          %v712 = vpop.trf.xlu0
          %v713 = vpop.trf.xlu0
          %v714 = vpop.trf.xlu0
          %v715 = vpop.trf.xlu0
          %v716 = vpop.trf.xlu0
          %v717 = vpop.trf.xlu0
          %v718 = vpop.trf.xlu0
          %v719 = vpop.trf.xlu0
          %v720 = vpop.trf.xlu0
          %v721 = vpop.trf.xlu0
          %v722 = vpop.trf.xlu0
          %v723 = vpop.trf.xlu0
          %v724 = vpack.c.bf16 %v708, %v708
          %vm725 = vcmask 517120
          %726 = vst.msk [vmem:[#allocation4] sm:$0x3] %vm725, %v724
        $region36: #{tpu_custom_call.1} parent=31 // pred_fallthru
          _
        %s727 = smul.u32 %s22, 256
        %s728 = sshra.s32 %s727, 4
        %s729 = sand.u32 %s727, 15
        %s730 = smul.addr %s728, 8
        %s731 = scalar_lea.vmem [#allocation2], %s730
        %v732 = vld [vmem:[%s731] sm:$0xff]
        %v733 = vld [vmem:[%s731 + $0x8] sm:$0xff]
        %v734 = vld [vmem:[%s731 + $0x10] sm:$0xff]
        %v735 = vld [vmem:[%s731 + $0x18] sm:$0xff]
        %v736 = vld [vmem:[%s731 + $0x20] sm:$0xff]
        %v737 = vld [vmem:[%s731 + $0x28] sm:$0xff]
        %v738 = vld [vmem:[%s731 + $0x30] sm:$0xff]
        %v739 = vld [vmem:[%s731 + $0x38] sm:$0xff]
        %v740 = vld [vmem:[%s731 + $0x40] sm:$0xff]
        %v741 = vld [vmem:[%s731 + $0x48] sm:$0xff]
        %v742 = vld [vmem:[%s731 + $0x50] sm:$0xff]
        %v743 = vld [vmem:[%s731 + $0x58] sm:$0xff]
        %v744 = vld [vmem:[%s731 + $0x60] sm:$0xff]
        %v745 = vld [vmem:[%s731 + $0x68] sm:$0xff]
        %v746 = vld [vmem:[%s731 + $0x70] sm:$0xff]
        %v747 = vld [vmem:[%s731 + $0x78] sm:$0xff]
        %v748 = vld [vmem:[#allocation4] sm:$0x3]
        %vm749 = vcmask 31744
        %v751 = vsel %vm749, %v732, 0
        %v754 = vsel %vm749, %v733, 0
        %v757 = vsel %vm749, %v734, 0
        %v760 = vsel %vm749, %v735, 0
        %v763 = vsel %vm749, %v736, 0
        %v766 = vsel %vm749, %v737, 0
        %v769 = vsel %vm749, %v738, 0
        %v772 = vsel %vm749, %v739, 0
        %v775 = vsel %vm749, %v740, 0
        %v778 = vsel %vm749, %v741, 0
        %v781 = vsel %vm749, %v742, 0
        %v784 = vsel %vm749, %v743, 0
        %v787 = vsel %vm749, %v744, 0
        %v790 = vsel %vm749, %v745, 0
        %v793 = vsel %vm749, %v746, 0
        %v796 = vsel %vm749, %v747, 0
        %vm798 = vcmask 1041408
        %v800 = vsel %vm798, %v748, 0
        %802 = vmatprep.subr.bf16.mxu0 0
        %803 = vmatpush1.bf16.msra.mxu0 %v800
        %804 = vmatprep.subr.bf16.mxu0 0
        %805 = vmatpush1.bf16.msra.mxu0 0
        %806 = vmatprep.subr.bf16.mxu0 0
        %807 = vmatpush1.bf16.msra.mxu0 0
        %808 = vmatprep.subr.bf16.mxu0 0
        %809 = vmatpush1.bf16.msra.mxu0 0
        %810 = vmatprep.subr.bf16.mxu0 0
        %811 = vmatpush1.bf16.msra.mxu0 0
        %812 = vmatprep.subr.bf16.mxu0 0
        %813 = vmatpush1.bf16.msra.mxu0 0
        %814 = vmatprep.subr.bf16.mxu0 0
        %815 = vmatpush1.bf16.msra.mxu0 0
        %816 = vmatprep.subr.bf16.mxu0 0
        %817 = vmatpush1.bf16.msra.mxu0 0
        %818 = vmatprep.subr.bf16.mxu0 0
        %819 = vmatpush1.bf16.msra.mxu0 0
        %820 = vmatprep.subr.bf16.mxu0 0
        %821 = vmatpush1.bf16.msra.mxu0 0
        %822 = vmatprep.subr.bf16.mxu0 0
        %823 = vmatpush1.bf16.msra.mxu0 0
        %824 = vmatprep.subr.bf16.mxu0 0
        %825 = vmatpush1.bf16.msra.mxu0 0
        %826 = vmatprep.subr.bf16.mxu0 0
        %827 = vmatpush1.bf16.msra.mxu0 0
        %828 = vmatprep.subr.bf16.mxu0 0
        %829 = vmatpush1.bf16.msra.mxu0 0
        %830 = vmatprep.subr.bf16.mxu0 0
        %831 = vmatpush1.bf16.msra.mxu0 0
        %832 = vmatprep.subr.bf16.mxu0 0
        %833 = vmatpush1.bf16.msra.mxu0 0
        %834 = vmatprep.mubr.bf16.mxu0 0
        %835 = vmatmul.mubr.bf16.gmra.mrb[0].mxu0 %v751
        %v836 = vpop.f32.mrb[0].mxu0
        %v837 = vadd.f32 0.0, %v836
        %v838 = vpop.f32.mrb[0].mxu0
        %v839 = vpop.f32.mrb[0].mxu0
        %v840 = vadd.f32 0.0, %v839
        %v841 = vpop.f32.mrb[0].mxu0
        %842 = vmatprep.mubr.bf16.mxu0 0
        %843 = vmatmul.mubr.bf16.gmra.mrb[0].mxu0 %v754
        %v844 = vpop.f32.mrb[0].mxu0
        %v845 = vadd.f32 0.0, %v844
        %v846 = vpop.f32.mrb[0].mxu0
        %v847 = vpop.f32.mrb[0].mxu0
        %v848 = vadd.f32 0.0, %v847
        %v849 = vpop.f32.mrb[0].mxu0
        %850 = vmatprep.mubr.bf16.mxu0 0
        %851 = vmatmul.mubr.bf16.gmra.mrb[0].mxu0 %v757
        %v852 = vpop.f32.mrb[0].mxu0
        %v853 = vadd.f32 0.0, %v852
        %v854 = vpop.f32.mrb[0].mxu0
        %v855 = vpop.f32.mrb[0].mxu0
        %v856 = vadd.f32 0.0, %v855
        %v857 = vpop.f32.mrb[0].mxu0
        %858 = vmatprep.mubr.bf16.mxu0 0
        %859 = vmatmul.mubr.bf16.gmra.mrb[0].mxu0 %v760
        %v860 = vpop.f32.mrb[0].mxu0
        %v861 = vadd.f32 0.0, %v860
        %v862 = vpop.f32.mrb[0].mxu0
        %v863 = vpop.f32.mrb[0].mxu0
        %v864 = vadd.f32 0.0, %v863
        %v865 = vpop.f32.mrb[0].mxu0
        %866 = vmatprep.mubr.bf16.mxu0 0
        %867 = vmatmul.mubr.bf16.gmra.mrb[0].mxu0 %v763
        %v868 = vpop.f32.mrb[0].mxu0
        %v869 = vadd.f32 0.0, %v868
        %v870 = vpop.f32.mrb[0].mxu0
        %v871 = vpop.f32.mrb[0].mxu0
        %v872 = vadd.f32 0.0, %v871
        %v873 = vpop.f32.mrb[0].mxu0
        %874 = vmatprep.mubr.bf16.mxu0 0
        %875 = vmatmul.mubr.bf16.gmra.mrb[0].mxu0 %v766
        %v876 = vpop.f32.mrb[0].mxu0
        %v877 = vadd.f32 0.0, %v876
        %v878 = vpop.f32.mrb[0].mxu0
        %v879 = vpop.f32.mrb[0].mxu0
        %v880 = vadd.f32 0.0, %v879
        %v881 = vpop.f32.mrb[0].mxu0
        %882 = vmatprep.mubr.bf16.mxu0 0
        %883 = vmatmul.mubr.bf16.gmra.mrb[0].mxu0 %v769
        %v884 = vpop.f32.mrb[0].mxu0
        %v885 = vadd.f32 0.0, %v884
        %v886 = vpop.f32.mrb[0].mxu0
        %v887 = vpop.f32.mrb[0].mxu0
        %v888 = vadd.f32 0.0, %v887
        %v889 = vpop.f32.mrb[0].mxu0
        %890 = vmatprep.mubr.bf16.mxu0 0
        %891 = vmatmul.mubr.bf16.gmra.mrb[0].mxu0 %v772
        %v892 = vpop.f32.mrb[0].mxu0
        %v893 = vadd.f32 0.0, %v892
        %v894 = vpop.f32.mrb[0].mxu0
        %v895 = vpop.f32.mrb[0].mxu0
        %v896 = vadd.f32 0.0, %v895
        %v897 = vpop.f32.mrb[0].mxu0
        %898 = vmatprep.mubr.bf16.mxu0 0
        %899 = vmatmul.mubr.bf16.gmra.mrb[0].mxu0 %v775
        %v900 = vpop.f32.mrb[0].mxu0
        %v901 = vadd.f32 0.0, %v900
        %v902 = vpop.f32.mrb[0].mxu0
        %v903 = vpop.f32.mrb[0].mxu0
        %v904 = vadd.f32 0.0, %v903
        %v905 = vpop.f32.mrb[0].mxu0
        %906 = vmatprep.mubr.bf16.mxu0 0
        %907 = vmatmul.mubr.bf16.gmra.mrb[0].mxu0 %v778
        %v908 = vpop.f32.mrb[0].mxu0
        %v909 = vadd.f32 0.0, %v908
        %v910 = vpop.f32.mrb[0].mxu0
        %v911 = vpop.f32.mrb[0].mxu0
        %v912 = vadd.f32 0.0, %v911
        %v913 = vpop.f32.mrb[0].mxu0
        %914 = vmatprep.mubr.bf16.mxu0 0
        %915 = vmatmul.mubr.bf16.gmra.mrb[0].mxu0 %v781
        %v916 = vpop.f32.mrb[0].mxu0
        %v917 = vadd.f32 0.0, %v916
        %v918 = vpop.f32.mrb[0].mxu0
        %v919 = vpop.f32.mrb[0].mxu0
        %v920 = vadd.f32 0.0, %v919
        %v921 = vpop.f32.mrb[0].mxu0
        %922 = vmatprep.mubr.bf16.mxu0 0
        %923 = vmatmul.mubr.bf16.gmra.mrb[0].mxu0 %v784
        %v924 = vpop.f32.mrb[0].mxu0
        %v925 = vadd.f32 0.0, %v924
        %v926 = vpop.f32.mrb[0].mxu0
        %v927 = vpop.f32.mrb[0].mxu0
        %v928 = vadd.f32 0.0, %v927
        %v929 = vpop.f32.mrb[0].mxu0
        %930 = vmatprep.mubr.bf16.mxu0 0
        %931 = vmatmul.mubr.bf16.gmra.mrb[0].mxu0 %v787
        %v932 = vpop.f32.mrb[0].mxu0
        %v933 = vadd.f32 0.0, %v932
        %v934 = vpop.f32.mrb[0].mxu0
        %v935 = vpop.f32.mrb[0].mxu0
        %v936 = vadd.f32 0.0, %v935
        %v937 = vpop.f32.mrb[0].mxu0
        %938 = vmatprep.mubr.bf16.mxu0 0
        %939 = vmatmul.mubr.bf16.gmra.mrb[0].mxu0 %v790
        %v940 = vpop.f32.mrb[0].mxu0
        %v941 = vadd.f32 0.0, %v940
        %v942 = vpop.f32.mrb[0].mxu0
        %v943 = vpop.f32.mrb[0].mxu0
        %v944 = vadd.f32 0.0, %v943
        %v945 = vpop.f32.mrb[0].mxu0
        %946 = vmatprep.mubr.bf16.mxu0 0
        %947 = vmatmul.mubr.bf16.gmra.mrb[0].mxu0 %v793
        %v948 = vpop.f32.mrb[0].mxu0
        %v949 = vadd.f32 0.0, %v948
        %v950 = vpop.f32.mrb[0].mxu0
        %v951 = vpop.f32.mrb[0].mxu0
        %v952 = vadd.f32 0.0, %v951
        %v953 = vpop.f32.mrb[0].mxu0
        %954 = vmatprep.mubr.bf16.mxu0 0
        %955 = vmatmul.mubr.bf16.gmra.mrb[0].mxu0 %v796
        %v956 = vpop.f32.mrb[0].mxu0
        %v957 = vadd.f32 0.0, %v956
        %v958 = vpop.f32.mrb[0].mxu0
        %v959 = vpop.f32.mrb[0].mxu0
        %v960 = vadd.f32 0.0, %v959
        %v961 = vpop.f32.mrb[0].mxu0
        %962 = vdwg.mxu0
        %vm963 = vcmask 523264
        %v964 = vsel %vm963, %v837, -inf
        %965 = vmax.xlane.f32.xlu0 %v964
        %v966 = vpop.xlane.xlu0 %965
        %v967 = vsel %vm963, %v840, -inf
        %968 = vmax.xlane.f32.xlu0 %v967
        %v969 = vpop.xlane.xlu0 %968
        %v970 = vsel %vm963, %v845, -inf
        %971 = vmax.xlane.f32.xlu0 %v970
        %v972 = vpop.xlane.xlu0 %971
        %v973 = vsel %vm963, %v848, -inf
        %974 = vmax.xlane.f32.xlu0 %v973
        %v975 = vpop.xlane.xlu0 %974
        %v976 = vsel %vm963, %v853, -inf
        %977 = vmax.xlane.f32.xlu0 %v976
        %v978 = vpop.xlane.xlu0 %977
        %v979 = vsel %vm963, %v856, -inf
        %980 = vmax.xlane.f32.xlu0 %v979
        %v981 = vpop.xlane.xlu0 %980
        %v982 = vsel %vm963, %v861, -inf
        %983 = vmax.xlane.f32.xlu0 %v982
        %v984 = vpop.xlane.xlu0 %983
        %v985 = vsel %vm963, %v864, -inf
        %986 = vmax.xlane.f32.xlu0 %v985
        %v987 = vpop.xlane.xlu0 %986
        %v988 = vsel %vm963, %v869, -inf
        %989 = vmax.xlane.f32.xlu0 %v988
        %v990 = vpop.xlane.xlu0 %989
        %v991 = vsel %vm963, %v872, -inf
        %992 = vmax.xlane.f32.xlu0 %v991
        %v993 = vpop.xlane.xlu0 %992
        %v994 = vsel %vm963, %v877, -inf
        %995 = vmax.xlane.f32.xlu0 %v994
        %v996 = vpop.xlane.xlu0 %995
        %v997 = vsel %vm963, %v880, -inf
        %998 = vmax.xlane.f32.xlu0 %v997
        %v999 = vpop.xlane.xlu0 %998
        %v1000 = vsel %vm963, %v885, -inf
        %1001 = vmax.xlane.f32.xlu0 %v1000
        %v1002 = vpop.xlane.xlu0 %1001
        %v1003 = vsel %vm963, %v888, -inf
        %1004 = vmax.xlane.f32.xlu0 %v1003
        %v1005 = vpop.xlane.xlu0 %1004
        %v1006 = vsel %vm963, %v893, -inf
        %1007 = vmax.xlane.f32.xlu0 %v1006
        %v1008 = vpop.xlane.xlu0 %1007
        %v1009 = vsel %vm963, %v896, -inf
        %1010 = vmax.xlane.f32.xlu0 %v1009
        %v1011 = vpop.xlane.xlu0 %1010
        %v1012 = vsel %vm963, %v901, -inf
        %1013 = vmax.xlane.f32.xlu0 %v1012
        %v1014 = vpop.xlane.xlu0 %1013
        %v1015 = vsel %vm963, %v904, -inf
        %1016 = vmax.xlane.f32.xlu0 %v1015
        %v1017 = vpop.xlane.xlu0 %1016
        %v1018 = vsel %vm963, %v909, -inf
        %1019 = vmax.xlane.f32.xlu0 %v1018
        %v1020 = vpop.xlane.xlu0 %1019
        %v1021 = vsel %vm963, %v912, -inf
        %1022 = vmax.xlane.f32.xlu0 %v1021
        %v1023 = vpop.xlane.xlu0 %1022
        %v1024 = vsel %vm963, %v917, -inf
        %1025 = vmax.xlane.f32.xlu0 %v1024
        %v1026 = vpop.xlane.xlu0 %1025
        %v1027 = vsel %vm963, %v920, -inf
        %1028 = vmax.xlane.f32.xlu0 %v1027
        %v1029 = vpop.xlane.xlu0 %1028
        %v1030 = vsel %vm963, %v925, -inf
        %1031 = vmax.xlane.f32.xlu0 %v1030
        %v1032 = vpop.xlane.xlu0 %1031
        %v1033 = vsel %vm963, %v928, -inf
        %1034 = vmax.xlane.f32.xlu0 %v1033
        %v1035 = vpop.xlane.xlu0 %1034
        %v1036 = vsel %vm963, %v933, -inf
        %1037 = vmax.xlane.f32.xlu0 %v1036
        %v1038 = vpop.xlane.xlu0 %1037
        %v1039 = vsel %vm963, %v936, -inf
        %1040 = vmax.xlane.f32.xlu0 %v1039
        %v1041 = vpop.xlane.xlu0 %1040
        %v1042 = vsel %vm963, %v941, -inf
        %1043 = vmax.xlane.f32.xlu0 %v1042
        %v1044 = vpop.xlane.xlu0 %1043
        %v1045 = vsel %vm963, %v944, -inf
        %1046 = vmax.xlane.f32.xlu0 %v1045
        %v1047 = vpop.xlane.xlu0 %1046
        %v1048 = vsel %vm963, %v949, -inf
        %1049 = vmax.xlane.f32.xlu0 %v1048
        %v1050 = vpop.xlane.xlu0 %1049
        %v1051 = vsel %vm963, %v952, -inf
        %1052 = vmax.xlane.f32.xlu0 %v1051
        %v1053 = vpop.xlane.xlu0 %1052
        %v1054 = vsel %vm963, %v957, -inf
        %1055 = vmax.xlane.f32.xlu0 %v1054
        %v1056 = vpop.xlane.xlu0 %1055
        %v1057 = vsel %vm963, %v960, -inf
        %1058 = vmax.xlane.f32.xlu0 %v1057
        %v1059 = vpop.xlane.xlu0 %1058
        %v1060 = vsub.f32 %v837, %v966
        %v1061 = vsub.f32 %v840, %v969
        %v1062 = vsub.f32 %v845, %v972
        %v1063 = vsub.f32 %v848, %v975
        %v1064 = vsub.f32 %v853, %v978
        %v1065 = vsub.f32 %v856, %v981
        %v1066 = vsub.f32 %v861, %v984
        %v1067 = vsub.f32 %v864, %v987
        %v1068 = vsub.f32 %v869, %v990
        %v1069 = vsub.f32 %v872, %v993
        %v1070 = vsub.f32 %v877, %v996
        %v1071 = vsub.f32 %v880, %v999
        %v1072 = vsub.f32 %v885, %v1002
        %v1073 = vsub.f32 %v888, %v1005
        %v1074 = vsub.f32 %v893, %v1008
        %v1075 = vsub.f32 %v896, %v1011
        %v1076 = vsub.f32 %v901, %v1014
        %v1077 = vsub.f32 %v904, %v1017
        %v1078 = vsub.f32 %v909, %v1020
        %v1079 = vsub.f32 %v912, %v1023
        %v1080 = vsub.f32 %v917, %v1026
        %v1081 = vsub.f32 %v920, %v1029
        %v1082 = vsub.f32 %v925, %v1032
        %v1083 = vsub.f32 %v928, %v1035
        %v1084 = vsub.f32 %v933, %v1038
        %v1085 = vsub.f32 %v936, %v1041
        %v1086 = vsub.f32 %v941, %v1044
        %v1087 = vsub.f32 %v944, %v1047
        %v1088 = vsub.f32 %v949, %v1050
        %v1089 = vsub.f32 %v952, %v1053
        %v1090 = vsub.f32 %v957, %v1056
        %v1091 = vsub.f32 %v960, %v1059
        %v1092 = vpack.c.bf16 %v1061, %v1060
        %v1093 = vpack.c.bf16 %v1063, %v1062
        %v1094 = vpack.c.bf16 %v1065, %v1064
        %v1095 = vpack.c.bf16 %v1067, %v1066
        %v1096 = vpack.c.bf16 %v1069, %v1068
        %v1097 = vpack.c.bf16 %v1071, %v1070
        %v1098 = vpack.c.bf16 %v1073, %v1072
        %v1099 = vpack.c.bf16 %v1075, %v1074
        %v1100 = vpack.c.bf16 %v1077, %v1076
        %v1101 = vpack.c.bf16 %v1079, %v1078
        %v1102 = vpack.c.bf16 %v1081, %v1080
        %v1103 = vpack.c.bf16 %v1083, %v1082
        %v1104 = vpack.c.bf16 %v1085, %v1084
        %v1105 = vpack.c.bf16 %v1087, %v1086
        %v1106 = vpack.c.bf16 %v1089, %v1088
        %v1107 = vpack.c.bf16 %v1091, %v1090
        %v1109 = vmul.bf16 %v1092, 1069105081
        %v1110 = vpow.bf16.pop %v1109
        %v1112 = vmul.bf16 %v1093, 1069105081
        %v1113 = vpow.bf16.pop %v1112
        %v1115 = vmul.bf16 %v1094, 1069105081
        %v1116 = vpow.bf16.pop %v1115
        %v1118 = vmul.bf16 %v1095, 1069105081
        %v1119 = vpow.bf16.pop %v1118
        %v1121 = vmul.bf16 %v1096, 1069105081
        %v1122 = vpow.bf16.pop %v1121
        %v1124 = vmul.bf16 %v1097, 1069105081
        %v1125 = vpow.bf16.pop %v1124
        %v1127 = vmul.bf16 %v1098, 1069105081
        %v1128 = vpow.bf16.pop %v1127
        %v1130 = vmul.bf16 %v1099, 1069105081
        %v1131 = vpow.bf16.pop %v1130
        %v1133 = vmul.bf16 %v1100, 1069105081
        %v1134 = vpow.bf16.pop %v1133
        %v1136 = vmul.bf16 %v1101, 1069105081
        %v1137 = vpow.bf16.pop %v1136
        %v1139 = vmul.bf16 %v1102, 1069105081
        %v1140 = vpow.bf16.pop %v1139
        %v1142 = vmul.bf16 %v1103, 1069105081
        %v1143 = vpow.bf16.pop %v1142
        %v1145 = vmul.bf16 %v1104, 1069105081
        %v1146 = vpow.bf16.pop %v1145
        %v1148 = vmul.bf16 %v1105, 1069105081
        %v1149 = vpow.bf16.pop %v1148
        %v1151 = vmul.bf16 %v1106, 1069105081
        %v1152 = vpow.bf16.pop %v1151
        %v1154 = vmul.bf16 %v1107, 1069105081
        %v1155 = vpow.bf16.pop %v1154
        %v1156 = vunpack.c.l.bf16 %v1110
        %v1157 = vunpack.c.h.bf16 %v1110
        %v1158 = vunpack.c.l.bf16 %v1113
        %v1159 = vunpack.c.h.bf16 %v1113
        %v1160 = vunpack.c.l.bf16 %v1116
        %v1161 = vunpack.c.h.bf16 %v1116
        %v1162 = vunpack.c.l.bf16 %v1119
        %v1163 = vunpack.c.h.bf16 %v1119
        %v1164 = vunpack.c.l.bf16 %v1122
        %v1165 = vunpack.c.h.bf16 %v1122
        %v1166 = vunpack.c.l.bf16 %v1125
        %v1167 = vunpack.c.h.bf16 %v1125
        %v1168 = vunpack.c.l.bf16 %v1128
        %v1169 = vunpack.c.h.bf16 %v1128
        %v1170 = vunpack.c.l.bf16 %v1131
        %v1171 = vunpack.c.h.bf16 %v1131
        %v1172 = vunpack.c.l.bf16 %v1134
        %v1173 = vunpack.c.h.bf16 %v1134
        %v1174 = vunpack.c.l.bf16 %v1137
        %v1175 = vunpack.c.h.bf16 %v1137
        %v1176 = vunpack.c.l.bf16 %v1140
        %v1177 = vunpack.c.h.bf16 %v1140
        %v1178 = vunpack.c.l.bf16 %v1143
        %v1179 = vunpack.c.h.bf16 %v1143
        %v1180 = vunpack.c.l.bf16 %v1146
        %v1181 = vunpack.c.h.bf16 %v1146
        %v1182 = vunpack.c.l.bf16 %v1149
        %v1183 = vunpack.c.h.bf16 %v1149
        %v1184 = vunpack.c.l.bf16 %v1152
        %v1185 = vunpack.c.h.bf16 %v1152
        %v1186 = vunpack.c.l.bf16 %v1155
        %v1187 = vunpack.c.h.bf16 %v1155
        %v1188 = vsel %vm963, %v1156, 0.0
        %1189 = vadd.xlane.f32.xlu0 %v1188
        %v1190 = vpop.xlane.xlu0 %1189
        %v1191 = vsel %vm963, %v1157, 0.0
        %1192 = vadd.xlane.f32.xlu0 %v1191
        %v1193 = vpop.xlane.xlu0 %1192
        %v1194 = vsel %vm963, %v1158, 0.0
        %1195 = vadd.xlane.f32.xlu0 %v1194
        %v1196 = vpop.xlane.xlu0 %1195
        %v1197 = vsel %vm963, %v1159, 0.0
        %1198 = vadd.xlane.f32.xlu0 %v1197
        %v1199 = vpop.xlane.xlu0 %1198
        %v1200 = vsel %vm963, %v1160, 0.0
        %1201 = vadd.xlane.f32.xlu0 %v1200
        %v1202 = vpop.xlane.xlu0 %1201
        %v1203 = vsel %vm963, %v1161, 0.0
        %1204 = vadd.xlane.f32.xlu0 %v1203
        %v1205 = vpop.xlane.xlu0 %1204
        %v1206 = vsel %vm963, %v1162, 0.0
        %1207 = vadd.xlane.f32.xlu0 %v1206
        %v1208 = vpop.xlane.xlu0 %1207
        %v1209 = vsel %vm963, %v1163, 0.0
        %1210 = vadd.xlane.f32.xlu0 %v1209
        %v1211 = vpop.xlane.xlu0 %1210
        %v1212 = vsel %vm963, %v1164, 0.0
        %1213 = vadd.xlane.f32.xlu0 %v1212
        %v1214 = vpop.xlane.xlu0 %1213
        %v1215 = vsel %vm963, %v1165, 0.0
        %1216 = vadd.xlane.f32.xlu0 %v1215
        %v1217 = vpop.xlane.xlu0 %1216
        %v1218 = vsel %vm963, %v1166, 0.0
        %1219 = vadd.xlane.f32.xlu0 %v1218
        %v1220 = vpop.xlane.xlu0 %1219
        %v1221 = vsel %vm963, %v1167, 0.0
        %1222 = vadd.xlane.f32.xlu0 %v1221
        %v1223 = vpop.xlane.xlu0 %1222
        %v1224 = vsel %vm963, %v1168, 0.0
        %1225 = vadd.xlane.f32.xlu0 %v1224
        %v1226 = vpop.xlane.xlu0 %1225
        %v1227 = vsel %vm963, %v1169, 0.0
        %1228 = vadd.xlane.f32.xlu0 %v1227
        %v1229 = vpop.xlane.xlu0 %1228
        %v1230 = vsel %vm963, %v1170, 0.0
        %1231 = vadd.xlane.f32.xlu0 %v1230
        %v1232 = vpop.xlane.xlu0 %1231
        %v1233 = vsel %vm963, %v1171, 0.0
        %1234 = vadd.xlane.f32.xlu0 %v1233
        %v1235 = vpop.xlane.xlu0 %1234
        %v1236 = vsel %vm963, %v1172, 0.0
        %1237 = vadd.xlane.f32.xlu0 %v1236
        %v1238 = vpop.xlane.xlu0 %1237
        %v1239 = vsel %vm963, %v1173, 0.0
        %1240 = vadd.xlane.f32.xlu0 %v1239
        %v1241 = vpop.xlane.xlu0 %1240
        %v1242 = vsel %vm963, %v1174, 0.0
        %1243 = vadd.xlane.f32.xlu0 %v1242
        %v1244 = vpop.xlane.xlu0 %1243
        %v1245 = vsel %vm963, %v1175, 0.0
        %1246 = vadd.xlane.f32.xlu0 %v1245
        %v1247 = vpop.xlane.xlu0 %1246
        %v1248 = vsel %vm963, %v1176, 0.0
        %1249 = vadd.xlane.f32.xlu0 %v1248
        %v1250 = vpop.xlane.xlu0 %1249
        %v1251 = vsel %vm963, %v1177, 0.0
        %1252 = vadd.xlane.f32.xlu0 %v1251
        %v1253 = vpop.xlane.xlu0 %1252
        %v1254 = vsel %vm963, %v1178, 0.0
        %1255 = vadd.xlane.f32.xlu0 %v1254
        %v1256 = vpop.xlane.xlu0 %1255
        %v1257 = vsel %vm963, %v1179, 0.0
        %1258 = vadd.xlane.f32.xlu0 %v1257
        %v1259 = vpop.xlane.xlu0 %1258
        %v1260 = vsel %vm963, %v1180, 0.0
        %1261 = vadd.xlane.f32.xlu0 %v1260
        %v1262 = vpop.xlane.xlu0 %1261
        %v1263 = vsel %vm963, %v1181, 0.0
        %1264 = vadd.xlane.f32.xlu0 %v1263
        %v1265 = vpop.xlane.xlu0 %1264
        %v1266 = vsel %vm963, %v1182, 0.0
        %1267 = vadd.xlane.f32.xlu0 %v1266
        %v1268 = vpop.xlane.xlu0 %1267
        %v1269 = vsel %vm963, %v1183, 0.0
        %1270 = vadd.xlane.f32.xlu0 %v1269
        %v1271 = vpop.xlane.xlu0 %1270
        %v1272 = vsel %vm963, %v1184, 0.0
        %1273 = vadd.xlane.f32.xlu0 %v1272
        %v1274 = vpop.xlane.xlu0 %1273
        %v1275 = vsel %vm963, %v1185, 0.0
        %1276 = vadd.xlane.f32.xlu0 %v1275
        %v1277 = vpop.xlane.xlu0 %1276
        %v1278 = vsel %vm963, %v1186, 0.0
        %1279 = vadd.xlane.f32.xlu0 %v1278
        %v1280 = vpop.xlane.xlu0 %1279
        %v1281 = vsel %vm963, %v1187, 0.0
        %1282 = vadd.xlane.f32.xlu0 %v1281
        %v1283 = vpop.xlane.xlu0 %1282
        %v1284 = vld [vmem:[#allocation5] sm:$0xff]
        %v1285 = vld [vmem:[#allocation5 + $0x8] sm:$0xff]
        %v1286 = vld [vmem:[#allocation5 + $0x10] sm:$0xff]
        %v1287 = vld [vmem:[#allocation5 + $0x18] sm:$0xff]
        %v1289 = vsel %vm963, %v1110, 0
        %v1292 = vsel %vm963, %v1113, 0
        %v1295 = vsel %vm963, %v1116, 0
        %v1298 = vsel %vm963, %v1119, 0
        %v1301 = vsel %vm963, %v1122, 0
        %v1304 = vsel %vm963, %v1125, 0
        %v1307 = vsel %vm963, %v1128, 0
        %v1310 = vsel %vm963, %v1131, 0
        %v1313 = vsel %vm963, %v1134, 0
        %v1316 = vsel %vm963, %v1137, 0
        %v1319 = vsel %vm963, %v1140, 0
        %v1322 = vsel %vm963, %v1143, 0
        %v1325 = vsel %vm963, %v1146, 0
        %v1328 = vsel %vm963, %v1149, 0
        %v1331 = vsel %vm963, %v1152, 0
        %v1334 = vsel %vm963, %v1155, 0
        %1336 = vmatprep.subr.bf16.mxu0 0
        %1337 = vmatpush1.bf16.msra.mxu0 %v1284
        %1338 = vmatprep.subr.bf16.mxu0 0
        %1339 = vmatpush1.bf16.msra.mxu0 %v1285
        %1340 = vmatprep.subr.bf16.mxu0 0
        %1341 = vmatpush1.bf16.msra.mxu0 %v1286
        %1342 = vmatprep.subr.bf16.mxu0 0
        %1343 = vmatpush1.bf16.msra.mxu0 %v1287
        %1344 = vmatprep.subr.bf16.mxu0 0
        %1345 = vmatpush1.bf16.msra.mxu0 0
        %1346 = vmatprep.subr.bf16.mxu0 0
        %1347 = vmatpush1.bf16.msra.mxu0 0
        %1348 = vmatprep.subr.bf16.mxu0 0
        %1349 = vmatpush1.bf16.msra.mxu0 0
        %1350 = vmatprep.subr.bf16.mxu0 0
        %1351 = vmatpush1.bf16.msra.mxu0 0
        %1352 = vmatprep.subr.bf16.mxu0 0
        %1353 = vmatpush1.bf16.msra.mxu0 0
        %1354 = vmatprep.subr.bf16.mxu0 0
        %1355 = vmatpush1.bf16.msra.mxu0 0
        %1356 = vmatprep.subr.bf16.mxu0 0
        %1357 = vmatpush1.bf16.msra.mxu0 0
        %1358 = vmatprep.subr.bf16.mxu0 0
        %1359 = vmatpush1.bf16.msra.mxu0 0
        %1360 = vmatprep.subr.bf16.mxu0 0
        %1361 = vmatpush1.bf16.msra.mxu0 0
        %1362 = vmatprep.subr.bf16.mxu0 0
        %1363 = vmatpush1.bf16.msra.mxu0 0
        %1364 = vmatprep.subr.bf16.mxu0 0
        %1365 = vmatpush1.bf16.msra.mxu0 0
        %1366 = vmatprep.subr.bf16.mxu0 0
        %1367 = vmatpush1.bf16.msra.mxu0 0
        %1368 = vmatprep.mubr.bf16.mxu0 0
        %1369 = vmatmul.mubr.bf16.gmra.mrb[0].mxu0 %v1289
        %v1370 = vpop.f32.mrb[0].mxu0
        %v1371 = vadd.f32 0.0, %v1370
        %v1372 = vpop.f32.mrb[0].mxu0
        %v1373 = vpop.f32.mrb[0].mxu0
        %v1374 = vadd.f32 0.0, %v1373
        %v1375 = vpop.f32.mrb[0].mxu0
        %1376 = vmatprep.mubr.bf16.mxu0 0
        %1377 = vmatmul.mubr.bf16.gmra.mrb[0].mxu0 %v1292
        %v1378 = vpop.f32.mrb[0].mxu0
        %v1379 = vadd.f32 0.0, %v1378
        %v1380 = vpop.f32.mrb[0].mxu0
        %v1381 = vpop.f32.mrb[0].mxu0
        %v1382 = vadd.f32 0.0, %v1381
        %v1383 = vpop.f32.mrb[0].mxu0
        %1384 = vmatprep.mubr.bf16.mxu0 0
        %1385 = vmatmul.mubr.bf16.gmra.mrb[0].mxu0 %v1295
        %v1386 = vpop.f32.mrb[0].mxu0
        %v1387 = vadd.f32 0.0, %v1386
        %v1388 = vpop.f32.mrb[0].mxu0
        %v1389 = vpop.f32.mrb[0].mxu0
        %v1390 = vadd.f32 0.0, %v1389
        %v1391 = vpop.f32.mrb[0].mxu0
        %1392 = vmatprep.mubr.bf16.mxu0 0
        %1393 = vmatmul.mubr.bf16.gmra.mrb[0].mxu0 %v1298
        %v1394 = vpop.f32.mrb[0].mxu0
        %v1395 = vadd.f32 0.0, %v1394
        %v1396 = vpop.f32.mrb[0].mxu0
        %v1397 = vpop.f32.mrb[0].mxu0
        %v1398 = vadd.f32 0.0, %v1397
        %v1399 = vpop.f32.mrb[0].mxu0
        %1400 = vmatprep.mubr.bf16.mxu0 0
        %1401 = vmatmul.mubr.bf16.gmra.mrb[0].mxu0 %v1301
        %v1402 = vpop.f32.mrb[0].mxu0
        %v1403 = vadd.f32 0.0, %v1402
        %v1404 = vpop.f32.mrb[0].mxu0
        %v1405 = vpop.f32.mrb[0].mxu0
        %v1406 = vadd.f32 0.0, %v1405
        %v1407 = vpop.f32.mrb[0].mxu0
        %1408 = vmatprep.mubr.bf16.mxu0 0
        %1409 = vmatmul.mubr.bf16.gmra.mrb[0].mxu0 %v1304
        %v1410 = vpop.f32.mrb[0].mxu0
        %v1411 = vadd.f32 0.0, %v1410
        %v1412 = vpop.f32.mrb[0].mxu0
        %v1413 = vpop.f32.mrb[0].mxu0
        %v1414 = vadd.f32 0.0, %v1413
        %v1415 = vpop.f32.mrb[0].mxu0
        %1416 = vmatprep.mubr.bf16.mxu0 0
        %1417 = vmatmul.mubr.bf16.gmra.mrb[0].mxu0 %v1307
        %v1418 = vpop.f32.mrb[0].mxu0
        %v1419 = vadd.f32 0.0, %v1418
        %v1420 = vpop.f32.mrb[0].mxu0
        %v1421 = vpop.f32.mrb[0].mxu0
        %v1422 = vadd.f32 0.0, %v1421
        %v1423 = vpop.f32.mrb[0].mxu0
        %1424 = vmatprep.mubr.bf16.mxu0 0
        %1425 = vmatmul.mubr.bf16.gmra.mrb[0].mxu0 %v1310
        %v1426 = vpop.f32.mrb[0].mxu0
        %v1427 = vadd.f32 0.0, %v1426
        %v1428 = vpop.f32.mrb[0].mxu0
        %v1429 = vpop.f32.mrb[0].mxu0
        %v1430 = vadd.f32 0.0, %v1429
        %v1431 = vpop.f32.mrb[0].mxu0
        %1432 = vmatprep.mubr.bf16.mxu0 0
        %1433 = vmatmul.mubr.bf16.gmra.mrb[0].mxu0 %v1313
        %v1434 = vpop.f32.mrb[0].mxu0
        %v1435 = vadd.f32 0.0, %v1434
        %v1436 = vpop.f32.mrb[0].mxu0
        %v1437 = vpop.f32.mrb[0].mxu0
        %v1438 = vadd.f32 0.0, %v1437
        %v1439 = vpop.f32.mrb[0].mxu0
        %1440 = vmatprep.mubr.bf16.mxu0 0
        %1441 = vmatmul.mubr.bf16.gmra.mrb[0].mxu0 %v1316
        %v1442 = vpop.f32.mrb[0].mxu0
        %v1443 = vadd.f32 0.0, %v1442
        %v1444 = vpop.f32.mrb[0].mxu0
        %v1445 = vpop.f32.mrb[0].mxu0
        %v1446 = vadd.f32 0.0, %v1445
        %v1447 = vpop.f32.mrb[0].mxu0
        %1448 = vmatprep.mubr.bf16.mxu0 0
        %1449 = vmatmul.mubr.bf16.gmra.mrb[0].mxu0 %v1319
        %v1450 = vpop.f32.mrb[0].mxu0
        %v1451 = vadd.f32 0.0, %v1450
        %v1452 = vpop.f32.mrb[0].mxu0
        %v1453 = vpop.f32.mrb[0].mxu0
        %v1454 = vadd.f32 0.0, %v1453
        %v1455 = vpop.f32.mrb[0].mxu0
        %1456 = vmatprep.mubr.bf16.mxu0 0
        %1457 = vmatmul.mubr.bf16.gmra.mrb[0].mxu0 %v1322
        %v1458 = vpop.f32.mrb[0].mxu0
        %v1459 = vadd.f32 0.0, %v1458
        %v1460 = vpop.f32.mrb[0].mxu0
        %v1461 = vpop.f32.mrb[0].mxu0
        %v1462 = vadd.f32 0.0, %v1461
        %v1463 = vpop.f32.mrb[0].mxu0
        %1464 = vmatprep.mubr.bf16.mxu0 0
        %1465 = vmatmul.mubr.bf16.gmra.mrb[0].mxu0 %v1325
        %v1466 = vpop.f32.mrb[0].mxu0
        %v1467 = vadd.f32 0.0, %v1466
        %v1468 = vpop.f32.mrb[0].mxu0
        %v1469 = vpop.f32.mrb[0].mxu0
        %v1470 = vadd.f32 0.0, %v1469
        %v1471 = vpop.f32.mrb[0].mxu0
        %1472 = vmatprep.mubr.bf16.mxu0 0
        %1473 = vmatmul.mubr.bf16.gmra.mrb[0].mxu0 %v1328
        %v1474 = vpop.f32.mrb[0].mxu0
        %v1475 = vadd.f32 0.0, %v1474
        %v1476 = vpop.f32.mrb[0].mxu0
        %v1477 = vpop.f32.mrb[0].mxu0
        %v1478 = vadd.f32 0.0, %v1477
        %v1479 = vpop.f32.mrb[0].mxu0
        %1480 = vmatprep.mubr.bf16.mxu0 0
        %1481 = vmatmul.mubr.bf16.gmra.mrb[0].mxu0 %v1331
        %v1482 = vpop.f32.mrb[0].mxu0
        %v1483 = vadd.f32 0.0, %v1482
        %v1484 = vpop.f32.mrb[0].mxu0
        %v1485 = vpop.f32.mrb[0].mxu0
        %v1486 = vadd.f32 0.0, %v1485
        %v1487 = vpop.f32.mrb[0].mxu0
        %1488 = vmatprep.mubr.bf16.mxu0 0
        %1489 = vmatmul.mubr.bf16.gmra.mrb[0].mxu0 %v1334
        %v1490 = vpop.f32.mrb[0].mxu0
        %v1491 = vadd.f32 0.0, %v1490
        %v1492 = vpop.f32.mrb[0].mxu0
        %v1493 = vpop.f32.mrb[0].mxu0
        %v1494 = vadd.f32 0.0, %v1493
        %v1495 = vpop.f32.mrb[0].mxu0
        %1496 = vdwg.mxu0
        %v1497 = vrcp.pop %v1190
        %v1498 = vrcp.pop %v1193
        %v1499 = vrcp.pop %v1196
        %v1500 = vrcp.pop %v1199
        %v1501 = vrcp.pop %v1202
        %v1502 = vrcp.pop %v1205
        %v1503 = vrcp.pop %v1208
        %v1504 = vrcp.pop %v1211
        %v1505 = vrcp.pop %v1214
        %v1506 = vrcp.pop %v1217
        %v1507 = vrcp.pop %v1220
        %v1508 = vrcp.pop %v1223
        %v1509 = vrcp.pop %v1226
        %v1510 = vrcp.pop %v1229
        %v1511 = vrcp.pop %v1232
        %v1512 = vrcp.pop %v1235
        %v1513 = vrcp.pop %v1238
        %v1514 = vrcp.pop %v1241
        %v1515 = vrcp.pop %v1244
        %v1516 = vrcp.pop %v1247
        %v1517 = vrcp.pop %v1250
        %v1518 = vrcp.pop %v1253
        %v1519 = vrcp.pop %v1256
        %v1520 = vrcp.pop %v1259
        %v1521 = vrcp.pop %v1262
        %v1522 = vrcp.pop %v1265
        %v1523 = vrcp.pop %v1268
        %v1524 = vrcp.pop %v1271
        %v1525 = vrcp.pop %v1274
        %v1526 = vrcp.pop %v1277
        %v1527 = vrcp.pop %v1280
        %v1528 = vrcp.pop %v1283
        %v1529 = vmul.f32 %v1371, %v1497
        %v1530 = vmul.f32 %v1374, %v1498
        %v1531 = vmul.f32 %v1379, %v1499
        %v1532 = vmul.f32 %v1382, %v1500
        %v1533 = vmul.f32 %v1387, %v1501
        %v1534 = vmul.f32 %v1390, %v1502
        %v1535 = vmul.f32 %v1395, %v1503
        %v1536 = vmul.f32 %v1398, %v1504
        %v1537 = vmul.f32 %v1403, %v1505
        %v1538 = vmul.f32 %v1406, %v1506
        %v1539 = vmul.f32 %v1411, %v1507
        %v1540 = vmul.f32 %v1414, %v1508
        %v1541 = vmul.f32 %v1419, %v1509
        %v1542 = vmul.f32 %v1422, %v1510
        %v1543 = vmul.f32 %v1427, %v1511
        %v1544 = vmul.f32 %v1430, %v1512
        %v1545 = vmul.f32 %v1435, %v1513
        %v1546 = vmul.f32 %v1438, %v1514
        %v1547 = vmul.f32 %v1443, %v1515
        %v1548 = vmul.f32 %v1446, %v1516
        %v1549 = vmul.f32 %v1451, %v1517
        %v1550 = vmul.f32 %v1454, %v1518
        %v1551 = vmul.f32 %v1459, %v1519
        %v1552 = vmul.f32 %v1462, %v1520
        %v1553 = vmul.f32 %v1467, %v1521
        %v1554 = vmul.f32 %v1470, %v1522
        %v1555 = vmul.f32 %v1475, %v1523
        %v1556 = vmul.f32 %v1478, %v1524
        %v1557 = vmul.f32 %v1483, %v1525
        %v1558 = vmul.f32 %v1486, %v1526
        %v1559 = vmul.f32 %v1491, %v1527
        %v1560 = vmul.f32 %v1494, %v1528
        %v1561 = vpack.c.bf16 %v1530, %v1529
        %v1562 = vpack.c.bf16 %v1532, %v1531
        %v1563 = vpack.c.bf16 %v1534, %v1533
        %v1564 = vpack.c.bf16 %v1536, %v1535
        %v1565 = vpack.c.bf16 %v1538, %v1537
        %v1566 = vpack.c.bf16 %v1540, %v1539
        %v1567 = vpack.c.bf16 %v1542, %v1541
        %v1568 = vpack.c.bf16 %v1544, %v1543
        %v1569 = vpack.c.bf16 %v1546, %v1545
        %v1570 = vpack.c.bf16 %v1548, %v1547
        %v1571 = vpack.c.bf16 %v1550, %v1549
        %v1572 = vpack.c.bf16 %v1552, %v1551
        %v1573 = vpack.c.bf16 %v1554, %v1553
        %v1574 = vpack.c.bf16 %v1556, %v1555
        %v1575 = vpack.c.bf16 %v1558, %v1557
        %v1576 = vpack.c.bf16 %v1560, %v1559
        %v1577 = vld [vmem:[%s2] sm:$0xf]
        %v1578 = vld [vmem:[%s2 + $0x4] sm:$0xf]
        %s1579 = scalar_lea.vmem %s182, %s727
        %v1580 = vld [vmem:[%s1579] sm:$0xff]
        %v1581 = vld [vmem:[%s1579 + $0x8] sm:$0xff]
        %v1582 = vld [vmem:[%s1579 + $0x10] sm:$0xff]
        %v1583 = vld [vmem:[%s1579 + $0x18] sm:$0xff]
        %v1584 = vld [vmem:[%s1579 + $0x20] sm:$0xff]
        %v1585 = vld [vmem:[%s1579 + $0x28] sm:$0xff]
        %v1586 = vld [vmem:[%s1579 + $0x30] sm:$0xff]
        %v1587 = vld [vmem:[%s1579 + $0x38] sm:$0xff]
        %v1588 = vld [vmem:[%s1579 + $0x40] sm:$0xff]
        %v1589 = vld [vmem:[%s1579 + $0x48] sm:$0xff]
        %v1590 = vld [vmem:[%s1579 + $0x50] sm:$0xff]
        %v1591 = vld [vmem:[%s1579 + $0x58] sm:$0xff]
        %v1592 = vld [vmem:[%s1579 + $0x60] sm:$0xff]
        %v1593 = vld [vmem:[%s1579 + $0x68] sm:$0xff]
        %v1594 = vld [vmem:[%s1579 + $0x70] sm:$0xff]
        %v1595 = vld [vmem:[%s1579 + $0x78] sm:$0xff]
        %v1596 = vld [vmem:[%s1579 + $0x80] sm:$0xff]
        %v1597 = vld [vmem:[%s1579 + $0x88] sm:$0xff]
        %v1598 = vld [vmem:[%s1579 + $0x90] sm:$0xff]
        %v1599 = vld [vmem:[%s1579 + $0x98] sm:$0xff]
        %v1600 = vld [vmem:[%s1579 + $0xa0] sm:$0xff]
        %v1601 = vld [vmem:[%s1579 + $0xa8] sm:$0xff]
        %v1602 = vld [vmem:[%s1579 + $0xb0] sm:$0xff]
        %v1603 = vld [vmem:[%s1579 + $0xb8] sm:$0xff]
        %v1604 = vld [vmem:[%s1579 + $0xc0] sm:$0xff]
        %v1605 = vld [vmem:[%s1579 + $0xc8] sm:$0xff]
        %v1606 = vld [vmem:[%s1579 + $0xd0] sm:$0xff]
        %v1607 = vld [vmem:[%s1579 + $0xd8] sm:$0xff]
        %v1608 = vld [vmem:[%s1579 + $0xe0] sm:$0xff]
        %v1609 = vld [vmem:[%s1579 + $0xe8] sm:$0xff]
        %v1610 = vld [vmem:[%s1579 + $0xf0] sm:$0xff]
        %v1611 = vld [vmem:[%s1579 + $0xf8] sm:$0xff]
        %v1614 = vunpack.c.l.b16 %v1577
        %v1615 = vunpack.c.l.b16 %v1578
        %v1616 = vpack.c.b16 %v1615, %v1614
        %vm1618 = vcmask 130048
        %v1620 = vsel %vm1618, %v1561, 0
        %v1623 = vsel %vm1618, %v1562, 0
        %v1626 = vsel %vm1618, %v1563, 0
        %v1629 = vsel %vm1618, %v1564, 0
        %v1632 = vsel %vm1618, %v1565, 0
        %v1635 = vsel %vm1618, %v1566, 0
        %v1638 = vsel %vm1618, %v1567, 0
        %v1641 = vsel %vm1618, %v1568, 0
        %v1644 = vsel %vm1618, %v1569, 0
        %v1647 = vsel %vm1618, %v1570, 0
        %v1650 = vsel %vm1618, %v1571, 0
        %v1653 = vsel %vm1618, %v1572, 0
        %v1656 = vsel %vm1618, %v1573, 0
        %v1659 = vsel %vm1618, %v1574, 0
        %v1662 = vsel %vm1618, %v1575, 0
        %v1665 = vsel %vm1618, %v1576, 0
        %1667 = vmatprep.subr.bf16.mxu0 0
        %1668 = vmatpush1.bf16.msra.mxu0 %v1616
        %1669 = vmatprep.subr.bf16.mxu0 0
        %1670 = vmatpush1.bf16.msra.mxu0 0
        %1671 = vmatprep.subr.bf16.mxu0 0
        %1672 = vmatpush1.bf16.msra.mxu0 0
        %1673 = vmatprep.subr.bf16.mxu0 0
        %1674 = vmatpush1.bf16.msra.mxu0 0
        %1675 = vmatprep.subr.bf16.mxu0 0
        %1676 = vmatpush1.bf16.msra.mxu0 0
        %1677 = vmatprep.subr.bf16.mxu0 0
        %1678 = vmatpush1.bf16.msra.mxu0 0
        %1679 = vmatprep.subr.bf16.mxu0 0
        %1680 = vmatpush1.bf16.msra.mxu0 0
        %1681 = vmatprep.subr.bf16.mxu0 0
        %1682 = vmatpush1.bf16.msra.mxu0 0
        %1683 = vmatprep.subr.bf16.mxu0 0
        %1684 = vmatpush1.bf16.msra.mxu0 0
        %1685 = vmatprep.subr.bf16.mxu0 0
        %1686 = vmatpush1.bf16.msra.mxu0 0
        %1687 = vmatprep.subr.bf16.mxu0 0
        %1688 = vmatpush1.bf16.msra.mxu0 0
        %1689 = vmatprep.subr.bf16.mxu0 0
        %1690 = vmatpush1.bf16.msra.mxu0 0
        %1691 = vmatprep.subr.bf16.mxu0 0
        %1692 = vmatpush1.bf16.msra.mxu0 0
        %1693 = vmatprep.subr.bf16.mxu0 0
        %1694 = vmatpush1.bf16.msra.mxu0 0
        %1695 = vmatprep.subr.bf16.mxu0 0
        %1696 = vmatpush1.bf16.msra.mxu0 0
        %1697 = vmatprep.subr.bf16.mxu0 0
        %1698 = vmatpush1.bf16.msra.mxu0 0
        %1699 = vmatprep.mubr.bf16.mxu0 0
        %1700 = vmatmul.mubr.bf16.gmra.mrb[0].mxu0 %v1620
        %v1701 = vpop.f32.mrb[0].mxu0
        %v1702 = vadd.f32 %v1580, %v1701
        %v1703 = vpop.f32.mrb[0].mxu0
        %v1704 = vpop.f32.mrb[0].mxu0
        %v1705 = vadd.f32 %v1581, %v1704
        %v1706 = vpop.f32.mrb[0].mxu0
        %1707 = vmatprep.mubr.bf16.mxu0 0
        %1708 = vmatmul.mubr.bf16.gmra.mrb[0].mxu0 %v1623
        %v1709 = vpop.f32.mrb[0].mxu0
        %v1710 = vadd.f32 %v1582, %v1709
        %v1711 = vpop.f32.mrb[0].mxu0
        %v1712 = vpop.f32.mrb[0].mxu0
        %v1713 = vadd.f32 %v1583, %v1712
        %v1714 = vpop.f32.mrb[0].mxu0
        %1715 = vmatprep.mubr.bf16.mxu0 0
        %1716 = vmatmul.mubr.bf16.gmra.mrb[0].mxu0 %v1626
        %v1717 = vpop.f32.mrb[0].mxu0
        %v1718 = vadd.f32 %v1584, %v1717
        %v1719 = vpop.f32.mrb[0].mxu0
        %v1720 = vpop.f32.mrb[0].mxu0
        %v1721 = vadd.f32 %v1585, %v1720
        %v1722 = vpop.f32.mrb[0].mxu0
        %1723 = vmatprep.mubr.bf16.mxu0 0
        %1724 = vmatmul.mubr.bf16.gmra.mrb[0].mxu0 %v1629
        %v1725 = vpop.f32.mrb[0].mxu0
        %v1726 = vadd.f32 %v1586, %v1725
        %v1727 = vpop.f32.mrb[0].mxu0
        %v1728 = vpop.f32.mrb[0].mxu0
        %v1729 = vadd.f32 %v1587, %v1728
        %v1730 = vpop.f32.mrb[0].mxu0
        %1731 = vmatprep.mubr.bf16.mxu0 0
        %1732 = vmatmul.mubr.bf16.gmra.mrb[0].mxu0 %v1632
        %v1733 = vpop.f32.mrb[0].mxu0
        %v1734 = vadd.f32 %v1588, %v1733
        %v1735 = vpop.f32.mrb[0].mxu0
        %v1736 = vpop.f32.mrb[0].mxu0
        %v1737 = vadd.f32 %v1589, %v1736
        %v1738 = vpop.f32.mrb[0].mxu0
        %1739 = vmatprep.mubr.bf16.mxu0 0
        %1740 = vmatmul.mubr.bf16.gmra.mrb[0].mxu0 %v1635
        %v1741 = vpop.f32.mrb[0].mxu0
        %v1742 = vadd.f32 %v1590, %v1741
        %v1743 = vpop.f32.mrb[0].mxu0
        %v1744 = vpop.f32.mrb[0].mxu0
        %v1745 = vadd.f32 %v1591, %v1744
        %v1746 = vpop.f32.mrb[0].mxu0
        %1747 = vmatprep.mubr.bf16.mxu0 0
        %1748 = vmatmul.mubr.bf16.gmra.mrb[0].mxu0 %v1638
        %v1749 = vpop.f32.mrb[0].mxu0
        %v1750 = vadd.f32 %v1592, %v1749
        %v1751 = vpop.f32.mrb[0].mxu0
        %v1752 = vpop.f32.mrb[0].mxu0
        %v1753 = vadd.f32 %v1593, %v1752
        %v1754 = vpop.f32.mrb[0].mxu0
        %1755 = vmatprep.mubr.bf16.mxu0 0
        %1756 = vmatmul.mubr.bf16.gmra.mrb[0].mxu0 %v1641
        %v1757 = vpop.f32.mrb[0].mxu0
        %v1758 = vadd.f32 %v1594, %v1757
        %v1759 = vpop.f32.mrb[0].mxu0
        %v1760 = vpop.f32.mrb[0].mxu0
        %v1761 = vadd.f32 %v1595, %v1760
        %v1762 = vpop.f32.mrb[0].mxu0
        %1763 = vmatprep.mubr.bf16.mxu0 0
        %1764 = vmatmul.mubr.bf16.gmra.mrb[0].mxu0 %v1644
        %v1765 = vpop.f32.mrb[0].mxu0
        %v1766 = vadd.f32 %v1596, %v1765
        %v1767 = vpop.f32.mrb[0].mxu0
        %v1768 = vpop.f32.mrb[0].mxu0
        %v1769 = vadd.f32 %v1597, %v1768
        %v1770 = vpop.f32.mrb[0].mxu0
        %1771 = vmatprep.mubr.bf16.mxu0 0
        %1772 = vmatmul.mubr.bf16.gmra.mrb[0].mxu0 %v1647
        %v1773 = vpop.f32.mrb[0].mxu0
        %v1774 = vadd.f32 %v1598, %v1773
        %v1775 = vpop.f32.mrb[0].mxu0
        %v1776 = vpop.f32.mrb[0].mxu0
        %v1777 = vadd.f32 %v1599, %v1776
        %v1778 = vpop.f32.mrb[0].mxu0
        %1779 = vmatprep.mubr.bf16.mxu0 0
        %1780 = vmatmul.mubr.bf16.gmra.mrb[0].mxu0 %v1650
        %v1781 = vpop.f32.mrb[0].mxu0
        %v1782 = vadd.f32 %v1600, %v1781
        %v1783 = vpop.f32.mrb[0].mxu0
        %v1784 = vpop.f32.mrb[0].mxu0
        %v1785 = vadd.f32 %v1601, %v1784
        %v1786 = vpop.f32.mrb[0].mxu0
        %1787 = vmatprep.mubr.bf16.mxu0 0
        %1788 = vmatmul.mubr.bf16.gmra.mrb[0].mxu0 %v1653
        %v1789 = vpop.f32.mrb[0].mxu0
        %v1790 = vadd.f32 %v1602, %v1789
        %v1791 = vpop.f32.mrb[0].mxu0
        %v1792 = vpop.f32.mrb[0].mxu0
        %v1793 = vadd.f32 %v1603, %v1792
        %v1794 = vpop.f32.mrb[0].mxu0
        %1795 = vmatprep.mubr.bf16.mxu0 0
        %1796 = vmatmul.mubr.bf16.gmra.mrb[0].mxu0 %v1656
        %v1797 = vpop.f32.mrb[0].mxu0
        %v1798 = vadd.f32 %v1604, %v1797
        %v1799 = vpop.f32.mrb[0].mxu0
        %v1800 = vpop.f32.mrb[0].mxu0
        %v1801 = vadd.f32 %v1605, %v1800
        %v1802 = vpop.f32.mrb[0].mxu0
        %1803 = vmatprep.mubr.bf16.mxu0 0
        %1804 = vmatmul.mubr.bf16.gmra.mrb[0].mxu0 %v1659
        %v1805 = vpop.f32.mrb[0].mxu0
        %v1806 = vadd.f32 %v1606, %v1805
        %v1807 = vpop.f32.mrb[0].mxu0
        %v1808 = vpop.f32.mrb[0].mxu0
        %v1809 = vadd.f32 %v1607, %v1808
        %v1810 = vpop.f32.mrb[0].mxu0
        %1811 = vmatprep.mubr.bf16.mxu0 0
        %1812 = vmatmul.mubr.bf16.gmra.mrb[0].mxu0 %v1662
        %v1813 = vpop.f32.mrb[0].mxu0
        %v1814 = vadd.f32 %v1608, %v1813
        %v1815 = vpop.f32.mrb[0].mxu0
        %v1816 = vpop.f32.mrb[0].mxu0
        %v1817 = vadd.f32 %v1609, %v1816
        %v1818 = vpop.f32.mrb[0].mxu0
        %1819 = vmatprep.mubr.bf16.mxu0 0
        %1820 = vmatmul.mubr.bf16.gmra.mrb[0].mxu0 %v1665
        %v1821 = vpop.f32.mrb[0].mxu0
        %v1822 = vadd.f32 %v1610, %v1821
        %v1823 = vpop.f32.mrb[0].mxu0
        %v1824 = vpop.f32.mrb[0].mxu0
        %v1825 = vadd.f32 %v1611, %v1824
        %v1826 = vpop.f32.mrb[0].mxu0
        %1827 = vdwg.mxu0
        %1828 = vxpose.xlu0.b32.start [1/16] %v1702, 128
        %1829 = vxpose.xlu0.b32.cont [2/16] %v1705, 128
        %1830 = vxpose.xlu0.b32.cont [3/16] %v1710, 128
        %1831 = vxpose.xlu0.b32.cont [4/16] %v1713, 128
        %1832 = vxpose.xlu0.b32.cont [5/16] %v1718, 128
        %1833 = vxpose.xlu0.b32.cont [6/16] %v1721, 128
        %1834 = vxpose.xlu0.b32.cont [7/16] %v1726, 128
        %1835 = vxpose.xlu0.b32.cont [8/16] %v1729, 128
        %1836 = vxpose.xlu0.b32.cont [9/16] %v1734, 128
        %1837 = vxpose.xlu0.b32.cont [10/16] %v1737, 128
        %1838 = vxpose.xlu0.b32.cont [11/16] %v1742, 128
        %1839 = vxpose.xlu0.b32.cont [12/16] %v1745, 128
        %1840 = vxpose.xlu0.b32.cont [13/16] %v1750, 128
        %1841 = vxpose.xlu0.b32.cont [14/16] %v1753, 128
        %1842 = vxpose.xlu0.b32.cont [15/16] %v1758, 128
        %1843 = vxpose.xlu0.b32.end [16/16] %v1761, 128
        %v1844 = vpop.trf.xlu0
        %v1845 = vpop.trf.xlu0
        %v1846 = vpop.trf.xlu0
        %v1847 = vpop.trf.xlu0
        %v1848 = vpop.trf.xlu0
        %v1849 = vpop.trf.xlu0
        %v1850 = vpop.trf.xlu0
        %v1851 = vpop.trf.xlu0
        %v1852 = vpop.trf.xlu0
        %v1853 = vpop.trf.xlu0
        %v1854 = vpop.trf.xlu0
        %v1855 = vpop.trf.xlu0
        %v1856 = vpop.trf.xlu0
        %v1857 = vpop.trf.xlu0
        %v1858 = vpop.trf.xlu0
        %v1859 = vpop.trf.xlu0
        %1860 = vxpose.xlu0.b32.start [1/16] %v1766, 128
        %1861 = vxpose.xlu0.b32.cont [2/16] %v1769, 128
        %1862 = vxpose.xlu0.b32.cont [3/16] %v1774, 128
        %1863 = vxpose.xlu0.b32.cont [4/16] %v1777, 128
        %1864 = vxpose.xlu0.b32.cont [5/16] %v1782, 128
        %1865 = vxpose.xlu0.b32.cont [6/16] %v1785, 128
        %1866 = vxpose.xlu0.b32.cont [7/16] %v1790, 128
        %1867 = vxpose.xlu0.b32.cont [8/16] %v1793, 128
        %1868 = vxpose.xlu0.b32.cont [9/16] %v1798, 128
        %1869 = vxpose.xlu0.b32.cont [10/16] %v1801, 128
        %1870 = vxpose.xlu0.b32.cont [11/16] %v1806, 128
        %1871 = vxpose.xlu0.b32.cont [12/16] %v1809, 128
        %1872 = vxpose.xlu0.b32.cont [13/16] %v1814, 128
        %1873 = vxpose.xlu0.b32.cont [14/16] %v1817, 128
        %1874 = vxpose.xlu0.b32.cont [15/16] %v1822, 128
        %1875 = vxpose.xlu0.b32.end [16/16] %v1825, 128
        %v1876 = vpop.trf.xlu0
        %v1877 = vpop.trf.xlu0
        %v1878 = vpop.trf.xlu0
        %v1879 = vpop.trf.xlu0
        %v1880 = vpop.trf.xlu0
        %v1881 = vpop.trf.xlu0
        %v1882 = vpop.trf.xlu0
        %v1883 = vpop.trf.xlu0
        %v1884 = vpop.trf.xlu0
        %v1885 = vpop.trf.xlu0
        %v1886 = vpop.trf.xlu0
        %v1887 = vpop.trf.xlu0
        %v1888 = vpop.trf.xlu0
        %v1889 = vpop.trf.xlu0
        %v1890 = vpop.trf.xlu0
        %v1891 = vpop.trf.xlu0
        %1892 = vst [vmem:[%s177] sm:$0xff] %v1844
        %1893 = vst [vmem:[%s177 + $0x8] sm:$0xff] %v1876
        %1894 = vst [vmem:[%s177 + $0x10] sm:$0xff] %v1845
        %1895 = vst [vmem:[%s177 + $0x18] sm:$0xff] %v1877
        %1896 = vst [vmem:[%s177 + $0x20] sm:$0xff] %v1846
        %1897 = vst [vmem:[%s177 + $0x28] sm:$0xff] %v1878
        %1898 = vst [vmem:[%s177 + $0x30] sm:$0xff] %v1847
        %1899 = vst [vmem:[%s177 + $0x38] sm:$0xff] %v1879
        %s1900 = sand.u32 %s107, 1
        %s1901 = scalar_lea.sflag [#allocation7], %s1900
        %s1902 = sand.u32 %s107, 1
        %s1903 = smul.addr %s1902, 64
        %s1904 = scalar_lea.vmem [#allocation6], %s1903
        // Predicated region
        $region37: #{tpu_custom_call.1} parent=31 // pred_check
          %p1905 = pneg %p117
        $region38: #{tpu_custom_call.1} parent=31 // pred_check_branch
          %1907 = sbr.rel (%p1905) target = $region40
        $region39: #{tpu_custom_call.1} parent=31 // pred_region
          %s1908 = smul.u32 2, %s22
          %s1910 = ssub.s32 1024, 1024
          %1911 = vsyncadd %s1901, %s1910
          %s1912 = smul.addr %s21, 8
          %s1913 = sadd.s32 %s1908, %s1912
          %s1914 = smul.addr %s1913, 128
          %s1915 = scalar_lea.hbm %s3, %s1914
          %s1916 = sshll.u32 %s1904, 4
          %s1917 = int_to_ptr.vmem [resolvable:$true] %s1916
          %1922 = dma.vmem_to_hbm [thread:$0]  %s1917, 1024, %s1915, %s1901, 256, 256, 16
        $region40: #{tpu_custom_call.1} parent=31 // pred_fallthru
          _
      $region32: #{tpu_custom_call.1} parent=5 // pred_fallthru
        _
      %p1923 = scmp.le.s32.totalorder 2, %s12
      // Predicated region
      $region41: #{tpu_custom_call.1} parent=5 // pred_check
        %p1924 = pneg %p1923
      $region42: #{tpu_custom_call.1} parent=5 // pred_check_branch
        %1926 = sbr.rel (%p1924) target = $region44
      $region43: #{tpu_custom_call.1} parent=5 // pred_region
        %s1927 = ssub.s32 %s12, 2
        // Predicated region
        $region45: #{tpu_custom_call.1} parent=43 // pred_check
          %p1928 = pneg %p123
        $region46: #{tpu_custom_call.1} parent=43 // pred_check_branch
          %1930 = sbr.rel (%p1928) target = $region48
        $region47: #{tpu_custom_call.1} parent=43 // pred_region
          %s1931 = sand.u32 %s108, 1
          %s1932 = scalar_lea.sflag [#allocation7], %s1931
          %s1933 = sand.u32 %s108, 1
          %s1934 = smul.addr %s1933, 64
          %s1935 = scalar_lea.vmem [#allocation6], %s1934
          %1936 = dma.done %s1932, 1024
        $region48: #{tpu_custom_call.1} parent=43 // pred_fallthru
          _
      $region44: #{tpu_custom_call.1} parent=5 // pred_fallthru
        _
    $region6: #{tpu_custom_call.1} parent=1 // loop_footer
      %s16 = sadd.s32 1, %s12
    $region7: #{tpu_custom_call.1} parent=1 // loop_footer_branch
      %11 = sbr.rel target = $region3
    $region8: #{tpu_custom_call.1} parent=1 // loop_exit
      _
    %1937 = vsyncpa [#allocation7], 1
    %s1938 = scalar_lea.sflag [#allocation7], 1
    %1939 = vsyncpa %s1938, 1

</llo_original>
